<compile_context>
chip_gen: v6e
topology: v6e:2x2x1
jax: 0.10.0
libtpu: 0.0.40
codegen_flags: <defaults>
</compile_context>

<pallas_src>
import functools
import math

import jax
import jax.numpy as jnp
from jax import lax
from jax.experimental import pallas as pl
from jax.experimental.pallas import tpu as pltpu


def _conv_bn_relu_kernel(x_ref, w_ref, shift_ref, o_ref, *,
                         hout, wout, groups, transpose_out):
    # x_ref:     (B_TILE, Hh, Wh, 4*Cin)  phase-decomposed padded input (bf16/f32)
    # w_ref:     (G, K_g, Cout_tile)      per-tap-group weights (BN scale folded in)
    # shift_ref: (1, Cout_tile)           folded BN shift (f32)
    # o_ref:     (Cout, B_TILE*Hout*Wout) if transpose_out (lane-dense small-Cout path)
    #            else (B_TILE, Hout*Wout, Cout_tile)
    bt = x_ref.shape[0]
    cout_t = shift_ref.shape[1]
    m = bt * hout * wout

    xv = x_ref[...]
    acc = jnp.zeros((m, cout_t), jnp.float32)
    # Each "group" is one (row-offset, col-offset, channel-offset, channel-width) matmul.
    for g, (ah, aw, c0, cw) in enumerate(groups):
        patch = xv[:, ah:ah + hout, aw:aw + wout, c0:c0 + cw].reshape(m, cw)
        acc = acc + jnp.dot(patch, w_ref[g], preferred_element_type=jnp.float32)

    out = jnp.maximum(acc + shift_ref[...], 0.0)           # folded BN shift + ReLU
    if transpose_out:
        # Small Cout: store (Cout, M) so the lane dim (M) is 128-dense -> unmasked stores.
        o_ref[...] = out.T.astype(o_ref.dtype)
    else:
        o_ref[...] = out.reshape(bt, hout * wout, cout_t).astype(o_ref.dtype)


def _pick_b_tile(b, hw, hh, wh, c_lanes, cout_tile, itemsize, transpose_out):
    """Largest batch tile (divisor of b) whose per-step working set fits a VMEM budget."""
    cands = [d for d in range(1, b + 1) if b % d == 0]
    if transpose_out:
        # keep the (Cout, B_TILE*Hout*Wout) output block legal / lane-dense
        cands = [d for d in cands if d == b or (d * hw) % 128 == 0]
    if not cands:
        cands = [b]

    def nbytes(d):
        x_blk = 2 * d * hh * wh * c_lanes * itemsize       # double-buffered input block
        acc = d * hw * cout_tile * 4                        # f32 accumulator
        out_blk = 2 * d * hw * cout_tile * 4                # double-buffered output block
        return x_blk + acc + out_blk

    fits = [d for d in cands if nbytes(d) <= 24 * 1024 * 1024]
    if not fits:
        return min(cands)
    capped = [d for d in fits if d * hw <= 4096]            # keep matmul M bounded
    return max(capped) if capped else min(fits)


@functools.partial(jax.jit, static_argnames=("compute_dtype",))
def conv_bn_relu_pallas(x_ncdhw, weight_folded, shift, *, compute_dtype=jnp.bfloat16):
    """relu(conv3d(x, w_folded) + shift), kernel (1,3,3), stride (1,2,2), pad (0,1,1).

    `weight_folded` is the Conv3d weight with the BN scale already folded in
    (w * gamma / sqrt(var + eps) per output channel); `shift` is the folded BN shift.
    """
    n, cin, t, h, w = x_ncdhw.shape
    assert h % 2 == 0 and w % 2 == 0, "phase decomposition assumes even H and W"
    cout = weight_folded.shape[0]
    hout, wout = h // 2, w // 2
    hw = hout * wout
    b = n * t
    hh, wh = (h + 2) // 2, (w + 2) // 2
    c_lanes = 4 * cin

    fuse_taps = cin < 128                    # small Cin: 4 fused matmuls of K=4*Cin
    if cout > 512 and cout % 256 == 0:       # big Cout: tile over a 2nd grid axis
        cout_tile = 256
    else:
        cout_tile = cout
    n_cout_tiles = cout // cout_tile
    transpose_out = cout < 128               # lane-dense output path for small Cout

    itemsize = jax.dtypes.canonicalize_dtype(compute_dtype).itemsize
    b_tile = _pick_b_tile(b, hw, hh, wh, c_lanes, cout_tile, itemsize, transpose_out)
    n_b_tiles = b // b_tile

    # ---- glue: one pad + one transpose into the phase ("super-pixel") layout ----
    # x_sp[b, R, C, (ph*2+pw)*Cin + ci] == x_padded[b, 2*R+ph, 2*C+pw, ci]
    xp = jnp.pad(x_ncdhw, ((0, 0), (0, 0), (0, 0), (1, 1), (1, 1)))
    xp = xp.reshape(n, cin, t, hh, 2, wh, 2)
    x_sp = jnp.transpose(xp, (0, 2, 3, 5, 4, 6, 1)).reshape(b, hh, wh, c_lanes)
    x_sp = x_sp.astype(compute_dtype)

    # ---- weights: (Cout, Cin, 1, 3, 3) -> per-tap-group layout, compute dtype ----
    w_k = jnp.transpose(weight_folded[:, :, 0, :, :], (2, 3, 1, 0))   # (3, 3, Cin, Cout)
    if fuse_taps:
        # Scatter the 3x3 taps into a zero-padded 2x2 "super-pixel" kernel: 4 matmuls
        # of K = 4*Cin instead of 9 matmuls of K = Cin.
        w2 = jnp.zeros((2, 2, 2, 2, cin, cout), w_k.dtype)
        for kh in range(3):
            for kw in range(3):
                ah, ph = kh // 2, kh % 2
                aw, pw = kw // 2, kw % 2
                w2 = w2.at[ah, aw, ph, pw].set(w_k[kh, kw])
        w_arr = w2.reshape(4, c_lanes, cout)
        groups = tuple((ah, aw, 0, c_lanes) for ah in range(2) for aw in range(2))
    else:
        # Large Cin: 9 matmuls, each channel slice is a lane-aligned block of width Cin.
        w_arr = w_k.reshape(9, cin, cout)
        groups = tuple((kh // 2, kw // 2, ((kh % 2) * 2 + (kw % 2)) * cin, cin)
                       for kh in range(3) for kw in range(3))
    w_arr = w_arr.astype(compute_dtype)
    shift2 = shift.reshape(1, cout).astype(jnp.float32)

    kernel = functools.partial(_conv_bn_relu_kernel, hout=hout, wout=wout,
                               groups=groups, transpose_out=transpose_out)

    if transpose_out:
        out_shape = jax.ShapeDtypeStruct((cout, b * hw), x_ncdhw.dtype)
        out_spec = pl.BlockSpec((cout, b_tile * hw), lambda i, j: (0, i))
    else:
        out_shape = jax.ShapeDtypeStruct((b, hw, cout), x_ncdhw.dtype)
        out_spec = pl.BlockSpec((b_tile, hw, cout_tile), lambda i, j: (i, 0, j))

    out = pl.pallas_call(
        kernel,
        out_shape=out_shape,
        grid_spec=pltpu.PrefetchScalarGridSpec(
            num_scalar_prefetch=0,
            grid=(n_b_tiles, n_cout_tiles),
            in_specs=[
                pl.BlockSpec((b_tile, hh, wh, c_lanes), lambda i, j: (i, 0, 0, 0)),
                pl.BlockSpec((len(groups), w_arr.shape[1], cout_tile),
                             lambda i, j: (0, 0, j)),
                pl.BlockSpec((1, cout_tile), lambda i, j: (0, j)),
            ],
            out_specs=out_spec,
        ),
        compiler_params=pltpu.CompilerParams(
            dimension_semantics=("parallel", "parallel"),
            vmem_limit_bytes=64 * 1024 * 1024),
    )(x_sp, w_arr, shift2)

    # back to PyTorch NCDHW: (N, Cout, T, Hout, Wout)
    if transpose_out:
        out = out.reshape(cout, n, t, hout, wout)
        return jnp.transpose(out, (1, 0, 2, 3, 4))
    out = out.reshape(n, t, hout, wout, cout)
    return jnp.transpose(out, (0, 4, 1, 2, 3))


# ----------------------------- module wrapper -----------------------------

def _fold_bn(weight, gamma, beta, running_mean, running_var, eps=1e-5):
    scale = gamma / jnp.sqrt(running_var + eps)
    w_folded = weight * scale[:, None, None, None, None]
    shift = beta - running_mean * scale
    return w_folded, shift


def _init_conv_bn(key, c_in, c_out):
    k1, k2, k3, k4, k5 = jax.random.split(key, 5)
    fan_in = c_in * 3 * 3
    weight = (jax.random.normal(k1, (c_out, c_in, 1, 3, 3), jnp.float32)
              * (2.0 / fan_in) ** 0.5)
    gamma = jax.random.uniform(k2, (c_out,), jnp.float32, 0.5, 1.5)
    beta = jax.random.normal(k3, (c_out,), jnp.float32) * 0.1
    r_mean = jax.random.normal(k4, (c_out,), jnp.float32) * 0.1
    r_var = jax.random.uniform(k5, (c_out,), jnp.float32, 0.5, 1.5)
    return _fold_bn(weight, gamma, beta, r_mean, r_var)


class SpatialModulationPallas:
    """Pallas port of SpatialModulation(inplanes, planes) (inference mode)."""

    def __init__(self, inplanes=(4, 8), planes=8, key=jax.random.PRNGKey(42),
                 compute_dtype=jnp.bfloat16):
        self.compute_dtype = compute_dtype
        self.branches = []
        for dim in inplanes:
            ds_factor = planes // dim
            ds_num = int(math.log2(ds_factor)) if ds_factor >= 2 else 0
            if ds_num < 1:
                self.branches.append(None)          # nn.Identity
                continue
            convs = []
            for dsi in range(ds_num):
                key, sub = jax.random.split(key)
                convs.append(_init_conv_bn(sub, dim * 2 ** dsi, dim * 2 ** (dsi + 1)))
            self.branches.append(convs)

    def __call__(self, inputs):
        out = []
        for i, feat in enumerate(inputs):
            if self.branches[i] is None:
                out.append(feat)                    # identity branch
            else:
                y = feat
                for (w_folded, shift) in self.branches[i]:
                    y = conv_bn_relu_pallas(y, w_folded, shift,
                                            compute_dtype=self.compute_dtype)
                out.append(y)
        return out


def _reference_conv_bn_relu(x, w_folded, shift):
    """Pure-JAX reference (Conv3d with BN-folded weights + shift + ReLU)."""
    out = lax.conv_general_dilated(
        x, w_folded,
        window_strides=(1, 2, 2),
        padding=((0, 0), (1, 1), (1, 1)),
        dimension_numbers=("NCDHW", "OIDHW", "NCDHW"),
        precision=lax.Precision.HIGHEST)
    return jnp.maximum(out + shift.reshape(1, -1, 1, 1, 1), 0.0)


if __name__ == "__main__":
    # Scaled-down config mirroring SpatialModulation(inplanes=[1024,2048], planes=2048):
    # inplanes=[4, 8], planes=8 -> branch 0: ConvModule(4, 8), branch 1: Identity.
    key = jax.random.PRNGKey(0)
    k0, k1, k3, k4 = jax.random.split(key, 4)
    x0 = jax.random.normal(k0, (2, 4, 2, 16, 16), jnp.float32)   # (N, Cin, T, H, W)
    x1 = jax.random.normal(k1, (2, 8, 2, 8, 8), jnp.float32)

    model = SpatialModulationPallas(inplanes=(4, 8), planes=8,
                                    key=jax.random.PRNGKey(42))
    outs = model([x0, x1])
    outs = [jax.block_until_ready(o) for o in outs]
    assert outs[0].shape == (2, 8, 2, 8, 8), outs[0].shape
    assert outs[1].shape == (2, 8, 2, 8, 8), outs[1].shape

    # Conv branch vs pure-JAX reference (bf16 MXU operands -> relaxed tolerance).
    w_f, sh = model.branches[0][0]
    ref0 = _reference_conv_bn_relu(x0, w_f, sh)
    assert jnp.allclose(outs[0], ref0, atol=5e-2, rtol=5e-2), \
        float(jnp.max(jnp.abs(outs[0] - ref0)))
    assert jnp.array_equal(outs[1], x1)                          # identity branch exact

    # f32-compute path of the same fused small-Cin kernel: tight tolerance.
    out_f32 = jax.block_until_ready(
        conv_bn_relu_pallas(x0, w_f, sh, compute_dtype=jnp.float32))
    assert jnp.allclose(out_f32, ref0, atol=1e-3, rtol=1e-3), \
        float(jnp.max(jnp.abs(out_f32 - ref0)))

    # Large-Cin path (Cin >= 128 -> 9 lane-aligned per-tap matmuls, no tap fusion).
    x3 = jax.random.normal(k3, (2, 128, 2, 16, 16), jnp.float32)
    w3, s3 = _init_conv_bn(jax.random.PRNGKey(3), 128, 8)
    out3 = jax.block_until_ready(conv_bn_relu_pallas(x3, w3, s3))
    ref3 = _reference_conv_bn_relu(x3, w3, s3)
    assert jnp.allclose(out3, ref3, atol=5e-2, rtol=5e-2), \
        float(jnp.max(jnp.abs(out3 - ref3)))

    # Large-Cout path (Cout > 512 -> Cout tiled over a second "parallel" grid axis).
    x4 = jax.random.normal(k4, (2, 4, 2, 16, 16), jnp.float32)
    w4, s4 = _init_conv_bn(jax.random.PRNGKey(4), 4, 1024)
    out4 = jax.block_until_ready(conv_bn_relu_pallas(x4, w4, s4))
    ref4 = _reference_conv_bn_relu(x4, w4, s4)
    assert jnp.allclose(out4, ref4, atol=5e-2, rtol=5e-2), \
        float(jnp.max(jnp.abs(out4 - ref4)))

    print("KERNEL_OK")
</pallas_src>

<mosaic_0001>
module attributes {stable_mosaic.version = 11 : i64} {
  func.func @_conv_bn_relu_kernel(%arg0: i32, %arg1: i32, %arg2: memref<4x9x9x16xbf16, #tpu.memory_space<vmem>>, %arg3: memref<4x16x8xbf16, #tpu.memory_space<vmem>>, %arg4: memref<1x8xf32, #tpu.memory_space<vmem>>, %arg5: memref<8x256xf32, #tpu.memory_space<vmem>>) attributes {dimension_semantics = [#tpu.dimension_semantics<parallel>, #tpu.dimension_semantics<parallel>], iteration_bounds = array<i64: 1, 1>, scalar_prefetch = 0 : i64, scratch_operands = 0 : i64, tpu.core_type = #tpu.core_type<tc>, window_params = [{transform_indices = @transform_0, window_bounds = array<i64: 4, 9, 9, 16>}, {transform_indices = @transform_1, window_bounds = array<i64: 4, 16, 8>}, {transform_indices = @transform_2, window_bounds = array<i64: 1, 8>}, {transform_indices = @transform_3, window_bounds = array<i64: 8, 256>}]} {
    %c0 = arith.constant 0 : index
    %c0_0 = arith.constant 0 : index
    %c0_1 = arith.constant 0 : index
    %c0_2 = arith.constant 0 : index
    %0 = vector.load %arg2[%c0, %c0_0, %c0_1, %c0_2] : memref<4x9x9x16xbf16, #tpu.memory_space<vmem>>, vector<4x9x9x16xbf16>
    %cst = arith.constant 0.000000e+00 : f32
    %1 = vector.broadcast %cst : f32 to vector<256x8xf32>
    %2 = vector.extract_strided_slice %0 {offsets = [0, 0, 0, 0], sizes = [4, 8, 8, 16], strides = [1, 1, 1, 1]} : vector<4x9x9x16xbf16> to vector<4x8x8x16xbf16>
    %3 = vector.shape_cast %2 : vector<4x8x8x16xbf16> to vector<256x16xbf16>
    %c0_3 = arith.constant 0 : index
    %c0_4 = arith.constant 0 : index
    %c0_5 = arith.constant 0 : index
    %4 = vector.load %arg3[%c0_3, %c0_4, %c0_5] : memref<4x16x8xbf16, #tpu.memory_space<vmem>>, vector<1x16x8xbf16>
    %5 = vector.shape_cast %4 : vector<1x16x8xbf16> to vector<16x8xbf16>
    %cst_6 = arith.constant dense<0.000000e+00> : vector<256x8xf32>
    %6 = tpu.matmul %3, %5, %cst_6 {dimension_numbers = #tpu.dot_dimension_numbers<[1], [0], [0], [1], [0, 0, 1, 1], [], []>} : vector<256x16xbf16>, vector<16x8xbf16>, vector<256x8xf32> -> vector<256x8xf32>
    %7 = arith.addf %1, %6 : vector<256x8xf32>
    %8 = vector.extract_strided_slice %0 {offsets = [0, 0, 1, 0], sizes = [4, 8, 8, 16], strides = [1, 1, 1, 1]} : vector<4x9x9x16xbf16> to vector<4x8x8x16xbf16>
    %9 = vector.shape_cast %8 : vector<4x8x8x16xbf16> to vector<256x16xbf16>
    %c1 = arith.constant 1 : index
    %c0_7 = arith.constant 0 : index
    %c0_8 = arith.constant 0 : index
    %10 = vector.load %arg3[%c1, %c0_7, %c0_8] : memref<4x16x8xbf16, #tpu.memory_space<vmem>>, vector<1x16x8xbf16>
    %11 = vector.shape_cast %10 : vector<1x16x8xbf16> to vector<16x8xbf16>
    %cst_9 = arith.constant dense<0.000000e+00> : vector<256x8xf32>
    %12 = tpu.matmul %9, %11, %cst_9 {dimension_numbers = #tpu.dot_dimension_numbers<[1], [0], [0], [1], [0, 0, 1, 1], [], []>} : vector<256x16xbf16>, vector<16x8xbf16>, vector<256x8xf32> -> vector<256x8xf32>
    %13 = arith.addf %7, %12 : vector<256x8xf32>
    %14 = vector.extract_strided_slice %0 {offsets = [0, 1, 0, 0], sizes = [4, 8, 8, 16], strides = [1, 1, 1, 1]} : vector<4x9x9x16xbf16> to vector<4x8x8x16xbf16>
    %15 = vector.shape_cast %14 : vector<4x8x8x16xbf16> to vector<256x16xbf16>
    %c2 = arith.constant 2 : index
    %c0_10 = arith.constant 0 : index
    %c0_11 = arith.constant 0 : index
    %16 = vector.load %arg3[%c2, %c0_10, %c0_11] : memref<4x16x8xbf16, #tpu.memory_space<vmem>>, vector<1x16x8xbf16>
    %17 = vector.shape_cast %16 : vector<1x16x8xbf16> to vector<16x8xbf16>
    %cst_12 = arith.constant dense<0.000000e+00> : vector<256x8xf32>
    %18 = tpu.matmul %15, %17, %cst_12 {dimension_numbers = #tpu.dot_dimension_numbers<[1], [0], [0], [1], [0, 0, 1, 1], [], []>} : vector<256x16xbf16>, vector<16x8xbf16>, vector<256x8xf32> -> vector<256x8xf32>
    %19 = arith.addf %13, %18 : vector<256x8xf32>
    %20 = vector.extract_strided_slice %0 {offsets = [0, 1, 1, 0], sizes = [4, 8, 8, 16], strides = [1, 1, 1, 1]} : vector<4x9x9x16xbf16> to vector<4x8x8x16xbf16>
    %21 = vector.shape_cast %20 : vector<4x8x8x16xbf16> to vector<256x16xbf16>
    %c3 = arith.constant 3 : index
    %c0_13 = arith.constant 0 : index
    %c0_14 = arith.constant 0 : index
    %22 = vector.load %arg3[%c3, %c0_13, %c0_14] : memref<4x16x8xbf16, #tpu.memory_space<vmem>>, vector<1x16x8xbf16>
    %23 = vector.shape_cast %22 : vector<1x16x8xbf16> to vector<16x8xbf16>
    %cst_15 = arith.constant dense<0.000000e+00> : vector<256x8xf32>
    %24 = tpu.matmul %21, %23, %cst_15 {dimension_numbers = #tpu.dot_dimension_numbers<[1], [0], [0], [1], [0, 0, 1, 1], [], []>} : vector<256x16xbf16>, vector<16x8xbf16>, vector<256x8xf32> -> vector<256x8xf32>
    %25 = arith.addf %19, %24 : vector<256x8xf32>
    %c0_16 = arith.constant 0 : index
    %c0_17 = arith.constant 0 : index
    %26 = vector.load %arg4[%c0_16, %c0_17] : memref<1x8xf32, #tpu.memory_space<vmem>>, vector<1x8xf32>
    %27 = vector.broadcast %26 : vector<1x8xf32> to vector<256x8xf32>
    %28 = arith.addf %25, %27 : vector<256x8xf32>
    %cst_18 = arith.constant 0.000000e+00 : f32
    %29 = vector.broadcast %cst_18 : f32 to vector<256x8xf32>
    %30 = arith.maximumf %28, %29 : vector<256x8xf32>
    %31 = tpu.transpose %30, [1, 0] : vector<256x8xf32> -> vector<8x256xf32>
    %c0_19 = arith.constant 0 : index
    %c0_20 = arith.constant 0 : index
    %32 = vector.load %arg5[%c0_19, %c0_20] : memref<8x256xf32, #tpu.memory_space<vmem>>, vector<8x256xf32>
    tpu.vector_store %arg5[%c0_19, %c0_20], %31 {strides = array<i32>} : memref<8x256xf32, #tpu.memory_space<vmem>>, vector<8x256xf32>,
    return
  }
  func.func @transform_0(%arg0: i32, %arg1: i32) -> (i32, i32, i32, i32) {
    %c0_i32 = arith.constant 0 : i32
    %c0_i32_0 = arith.constant 0 : i32
    %c0_i32_1 = arith.constant 0 : i32
    %c0_i32_2 = arith.constant 0 : i32
    return %arg0, %c0_i32, %c0_i32_0, %c0_i32_1 : i32, i32, i32, i32
  }
  func.func @transform_1(%arg0: i32, %arg1: i32) -> (i32, i32, i32) {
    %c0_i32 = arith.constant 0 : i32
    %c0_i32_0 = arith.constant 0 : i32
    %c0_i32_1 = arith.constant 0 : i32
    return %c0_i32, %c0_i32_0, %arg1 : i32, i32, i32
  }
  func.func @transform_2(%arg0: i32, %arg1: i32) -> (i32, i32) {
    %c0_i32 = arith.constant 0 : i32
    %c0_i32_0 = arith.constant 0 : i32
    return %c0_i32, %arg1 : i32, i32
  }
  func.func @transform_3(%arg0: i32, %arg1: i32) -> (i32, i32) {
    %c0_i32 = arith.constant 0 : i32
    %c0_i32_0 = arith.constant 0 : i32
    return %c0_i32, %arg0 : i32, i32
  }
}

</mosaic_0001>

<llo_original>
// kernel: conv_bn_relu_pallas.1
$region0: #{conv_bn_relu_pallas.1}
  #allocation0 [shape = 'u32[]', space=smem, size = 0x4, offset = 0x4, fixed_abs, tag = 'smem constant byte address 0x4 - core index']
  #allocation1 [shape = 'u32[144,128]{1,0:T(1,128)}', space=vmem, size = 0x12000, scoped, tag = 'internal scratch']
  %s0 = inlined_call_operand.vmem [shape: bf16[4,9,9,16], index: 0, kind: input, shape index: {}]
  %s1 = inlined_call_operand.vmem [shape: bf16[4,16,8], index: 1, kind: input, shape index: {}]
  %s2 = inlined_call_operand.vmem [shape: f32[1,8], index: 2, kind: input, shape index: {}]
  %s3 = inlined_call_operand.vmem [shape: f32[8,256], index: 3, kind: output, shape index: {}]
  %s4 = sld [smem:[#allocation0]]
  $region22: #{conv_bn_relu_pallas.1} parent=0
    _
  %s6 = ssub.s32 1, %s4
  %s7 = scalar_select 0, %s6, %s4
  // Predicated region
  $region2: #{conv_bn_relu_pallas.1} parent=0 // pred_check
    _
  $region3: #{conv_bn_relu_pallas.1} parent=0 // pred_check_branch
    %9 = sbr.rel (0) target = $region5
  $region4: #{conv_bn_relu_pallas.1} parent=0 // pred_region
    _
  $region5: #{conv_bn_relu_pallas.1} parent=0 // pred_fallthru
    _
  // Predicated region
  $region6: #{conv_bn_relu_pallas.1} parent=0 // pred_check
    _
  $region7: #{conv_bn_relu_pallas.1} parent=0 // pred_check_branch
    %11 = sbr.rel (0) target = $region9
  $region8: #{conv_bn_relu_pallas.1} parent=0 // pred_region
    _
  $region9: #{conv_bn_relu_pallas.1} parent=0 // pred_fallthru
    _
  // Predicated region
  $region10: #{conv_bn_relu_pallas.1} parent=0 // pred_check
    _
  $region11: #{conv_bn_relu_pallas.1} parent=0 // pred_check_branch
    %13 = sbr.rel (0) target = $region13
  $region12: #{conv_bn_relu_pallas.1} parent=0 // pred_region
    _
  $region13: #{conv_bn_relu_pallas.1} parent=0 // pred_fallthru
    _
  %v15 = vld [vmem:[%s0] sm:$0xf]
  %v16 = vld [vmem:[%s0 + $0x4] sm:$0x1]
  %v17 = vld [vmem:[%s0 + $0x8] sm:$0xf]
  %v18 = vld [vmem:[%s0 + $0xc] sm:$0x1]
  %v19 = vld [vmem:[%s0 + $0x10] sm:$0xf]
  %v20 = vld [vmem:[%s0 + $0x14] sm:$0x1]
  %v21 = vld [vmem:[%s0 + $0x18] sm:$0xf]
  %v22 = vld [vmem:[%s0 + $0x1c] sm:$0x1]
  %v23 = vld [vmem:[%s0 + $0x20] sm:$0xf]
  %v24 = vld [vmem:[%s0 + $0x24] sm:$0x1]
  %v25 = vld [vmem:[%s0 + $0x28] sm:$0xf]
  %v26 = vld [vmem:[%s0 + $0x2c] sm:$0x1]
  %v27 = vld [vmem:[%s0 + $0x30] sm:$0xf]
  %v28 = vld [vmem:[%s0 + $0x34] sm:$0x1]
  %v29 = vld [vmem:[%s0 + $0x38] sm:$0xf]
  %v30 = vld [vmem:[%s0 + $0x3c] sm:$0x1]
  %v31 = vld [vmem:[%s0 + $0x40] sm:$0xf]
  %v32 = vld [vmem:[%s0 + $0x44] sm:$0x1]
  %v33 = vld [vmem:[%s0 + $0x48] sm:$0xf]
  %v34 = vld [vmem:[%s0 + $0x4c] sm:$0x1]
  %v35 = vld [vmem:[%s0 + $0x50] sm:$0xf]
  %v36 = vld [vmem:[%s0 + $0x54] sm:$0x1]
  %v37 = vld [vmem:[%s0 + $0x58] sm:$0xf]
  %v38 = vld [vmem:[%s0 + $0x5c] sm:$0x1]
  %v39 = vld [vmem:[%s0 + $0x60] sm:$0xf]
  %v40 = vld [vmem:[%s0 + $0x64] sm:$0x1]
  %v41 = vld [vmem:[%s0 + $0x68] sm:$0xf]
  %v42 = vld [vmem:[%s0 + $0x6c] sm:$0x1]
  %v43 = vld [vmem:[%s0 + $0x70] sm:$0xf]
  %v44 = vld [vmem:[%s0 + $0x74] sm:$0x1]
  %v45 = vld [vmem:[%s0 + $0x78] sm:$0xf]
  %v46 = vld [vmem:[%s0 + $0x7c] sm:$0x1]
  %v47 = vld [vmem:[%s0 + $0x80] sm:$0xf]
  %v48 = vld [vmem:[%s0 + $0x84] sm:$0x1]
  %v49 = vld [vmem:[%s0 + $0x88] sm:$0xf]
  %v50 = vld [vmem:[%s0 + $0x8c] sm:$0x1]
  %v51 = vld [vmem:[%s0 + $0x90] sm:$0xf]
  %v52 = vld [vmem:[%s0 + $0x94] sm:$0x1]
  %v53 = vld [vmem:[%s0 + $0x98] sm:$0xf]
  %v54 = vld [vmem:[%s0 + $0x9c] sm:$0x1]
  %v55 = vld [vmem:[%s0 + $0xa0] sm:$0xf]
  %v56 = vld [vmem:[%s0 + $0xa4] sm:$0x1]
  %v57 = vld [vmem:[%s0 + $0xa8] sm:$0xf]
  %v58 = vld [vmem:[%s0 + $0xac] sm:$0x1]
  %v59 = vld [vmem:[%s0 + $0xb0] sm:$0xf]
  %v60 = vld [vmem:[%s0 + $0xb4] sm:$0x1]
  %v61 = vld [vmem:[%s0 + $0xb8] sm:$0xf]
  %v62 = vld [vmem:[%s0 + $0xbc] sm:$0x1]
  %v63 = vld [vmem:[%s0 + $0xc0] sm:$0xf]
  %v64 = vld [vmem:[%s0 + $0xc4] sm:$0x1]
  %v65 = vld [vmem:[%s0 + $0xc8] sm:$0xf]
  %v66 = vld [vmem:[%s0 + $0xcc] sm:$0x1]
  %v67 = vld [vmem:[%s0 + $0xd0] sm:$0xf]
  %v68 = vld [vmem:[%s0 + $0xd4] sm:$0x1]
  %v69 = vld [vmem:[%s0 + $0xd8] sm:$0xf]
  %v70 = vld [vmem:[%s0 + $0xdc] sm:$0x1]
  %v71 = vld [vmem:[%s0 + $0xe0] sm:$0xf]
  %v72 = vld [vmem:[%s0 + $0xe4] sm:$0x1]
  %v73 = vld [vmem:[%s0 + $0xe8] sm:$0xf]
  %v74 = vld [vmem:[%s0 + $0xec] sm:$0x1]
  %v75 = vld [vmem:[%s0 + $0xf0] sm:$0xf]
  %v76 = vld [vmem:[%s0 + $0xf4] sm:$0x1]
  %v77 = vld [vmem:[%s0 + $0xf8] sm:$0xf]
  %v78 = vld [vmem:[%s0 + $0xfc] sm:$0x1]
  %v79 = vld [vmem:[%s0 + $0x100] sm:$0xf]
  %v80 = vld [vmem:[%s0 + $0x104] sm:$0x1]
  %v81 = vld [vmem:[%s0 + $0x108] sm:$0xf]
  %v82 = vld [vmem:[%s0 + $0x10c] sm:$0x1]
  %v83 = vld [vmem:[%s0 + $0x110] sm:$0xf]
  %v84 = vld [vmem:[%s0 + $0x114] sm:$0x1]
  %v85 = vld [vmem:[%s0 + $0x118] sm:$0xf]
  %v86 = vld [vmem:[%s0 + $0x11c] sm:$0x1]
  %v87 = vld [vmem:[%s1] sm:$0xf]
  %v88 = vld [vmem:[%s1 + $0x4] sm:$0xf]
  %vm89 = vsmask.f32 3328
  %vm90 = vsmask.f32 7440
  %vm91 = vmor %vm89, %vm90
  %v93 = vshrl.u32 %v15, 16
  %v95 = vrot.slane %v93, 4
  %v96 = vshll.u32 %v15, 16
  %v98 = vrot.slane %v96, 5
  %v99 = vor.u32 %v95, %v98
  %v100 = vrot.slane %v99, 4
  %v102 = vshll.u32 %v16, 16
  %v104 = vrot.slane %v102, 5
  %v105 = vsel %vm91, %v100, %v104
  %v107 = vshrl.u32 %v17, 16
  %v109 = vrot.slane %v107, 4
  %v110 = vshll.u32 %v17, 16
  %v112 = vrot.slane %v110, 5
  %v113 = vor.u32 %v109, %v112
  %v114 = vrot.slane %v113, 4
  %v116 = vshll.u32 %v18, 16
  %v118 = vrot.slane %v116, 5
  %v119 = vsel %vm91, %v114, %v118
  %v121 = vshrl.u32 %v19, 16
  %v123 = vrot.slane %v121, 4
  %v124 = vshll.u32 %v19, 16
  %v126 = vrot.slane %v124, 5
  %v127 = vor.u32 %v123, %v126
  %v128 = vrot.slane %v127, 4
  %v130 = vshll.u32 %v20, 16
  %v132 = vrot.slane %v130, 5
  %v133 = vsel %vm91, %v128, %v132
  %v135 = vshrl.u32 %v21, 16
  %v137 = vrot.slane %v135, 4
  %v138 = vshll.u32 %v21, 16
  %v140 = vrot.slane %v138, 5
  %v141 = vor.u32 %v137, %v140
  %v142 = vrot.slane %v141, 4
  %v144 = vshll.u32 %v22, 16
  %v146 = vrot.slane %v144, 5
  %v147 = vsel %vm91, %v142, %v146
  %v149 = vshrl.u32 %v23, 16
  %v151 = vrot.slane %v149, 4
  %v152 = vshll.u32 %v23, 16
  %v154 = vrot.slane %v152, 5
  %v155 = vor.u32 %v151, %v154
  %v156 = vrot.slane %v155, 4
  %v158 = vshll.u32 %v24, 16
  %v160 = vrot.slane %v158, 5
  %v161 = vsel %vm91, %v156, %v160
  %v163 = vshrl.u32 %v25, 16
  %v165 = vrot.slane %v163, 4
  %v166 = vshll.u32 %v25, 16
  %v168 = vrot.slane %v166, 5
  %v169 = vor.u32 %v165, %v168
  %v170 = vrot.slane %v169, 4
  %v172 = vshll.u32 %v26, 16
  %v174 = vrot.slane %v172, 5
  %v175 = vsel %vm91, %v170, %v174
  %v177 = vshrl.u32 %v27, 16
  %v179 = vrot.slane %v177, 4
  %v180 = vshll.u32 %v27, 16
  %v182 = vrot.slane %v180, 5
  %v183 = vor.u32 %v179, %v182
  %v184 = vrot.slane %v183, 4
  %v186 = vshll.u32 %v28, 16
  %v188 = vrot.slane %v186, 5
  %v189 = vsel %vm91, %v184, %v188
  %v191 = vshrl.u32 %v29, 16
  %v193 = vrot.slane %v191, 4
  %v194 = vshll.u32 %v29, 16
  %v196 = vrot.slane %v194, 5
  %v197 = vor.u32 %v193, %v196
  %v198 = vrot.slane %v197, 4
  %v200 = vshll.u32 %v30, 16
  %v202 = vrot.slane %v200, 5
  %v203 = vsel %vm91, %v198, %v202
  %v205 = vshrl.u32 %v33, 16
  %v207 = vrot.slane %v205, 4
  %v208 = vshll.u32 %v33, 16
  %v210 = vrot.slane %v208, 5
  %v211 = vor.u32 %v207, %v210
  %v212 = vrot.slane %v211, 4
  %v214 = vshll.u32 %v34, 16
  %v216 = vrot.slane %v214, 5
  %v217 = vsel %vm91, %v212, %v216
  %v219 = vshrl.u32 %v35, 16
  %v221 = vrot.slane %v219, 4
  %v222 = vshll.u32 %v35, 16
  %v224 = vrot.slane %v222, 5
  %v225 = vor.u32 %v221, %v224
  %v226 = vrot.slane %v225, 4
  %v228 = vshll.u32 %v36, 16
  %v230 = vrot.slane %v228, 5
  %v231 = vsel %vm91, %v226, %v230
  %v233 = vshrl.u32 %v37, 16
  %v235 = vrot.slane %v233, 4
  %v236 = vshll.u32 %v37, 16
  %v238 = vrot.slane %v236, 5
  %v239 = vor.u32 %v235, %v238
  %v240 = vrot.slane %v239, 4
  %v242 = vshll.u32 %v38, 16
  %v244 = vrot.slane %v242, 5
  %v245 = vsel %vm91, %v240, %v244
  %v247 = vshrl.u32 %v39, 16
  %v249 = vrot.slane %v247, 4
  %v250 = vshll.u32 %v39, 16
  %v252 = vrot.slane %v250, 5
  %v253 = vor.u32 %v249, %v252
  %v254 = vrot.slane %v253, 4
  %v256 = vshll.u32 %v40, 16
  %v258 = vrot.slane %v256, 5
  %v259 = vsel %vm91, %v254, %v258
  %v261 = vshrl.u32 %v41, 16
  %v263 = vrot.slane %v261, 4
  %v264 = vshll.u32 %v41, 16
  %v266 = vrot.slane %v264, 5
  %v267 = vor.u32 %v263, %v266
  %v268 = vrot.slane %v267, 4
  %v270 = vshll.u32 %v42, 16
  %v272 = vrot.slane %v270, 5
  %v273 = vsel %vm91, %v268, %v272
  %v275 = vshrl.u32 %v43, 16
  %v277 = vrot.slane %v275, 4
  %v278 = vshll.u32 %v43, 16
  %v280 = vrot.slane %v278, 5
  %v281 = vor.u32 %v277, %v280
  %v282 = vrot.slane %v281, 4
  %v284 = vshll.u32 %v44, 16
  %v286 = vrot.slane %v284, 5
  %v287 = vsel %vm91, %v282, %v286
  %v289 = vshrl.u32 %v45, 16
  %v291 = vrot.slane %v289, 4
  %v292 = vshll.u32 %v45, 16
  %v294 = vrot.slane %v292, 5
  %v295 = vor.u32 %v291, %v294
  %v296 = vrot.slane %v295, 4
  %v298 = vshll.u32 %v46, 16
  %v300 = vrot.slane %v298, 5
  %v301 = vsel %vm91, %v296, %v300
  %v303 = vshrl.u32 %v47, 16
  %v305 = vrot.slane %v303, 4
  %v306 = vshll.u32 %v47, 16
  %v308 = vrot.slane %v306, 5
  %v309 = vor.u32 %v305, %v308
  %v310 = vrot.slane %v309, 4
  %v312 = vshll.u32 %v48, 16
  %v314 = vrot.slane %v312, 5
  %v315 = vsel %vm91, %v310, %v314
  %v317 = vshrl.u32 %v51, 16
  %v319 = vrot.slane %v317, 4
  %v320 = vshll.u32 %v51, 16
  %v322 = vrot.slane %v320, 5
  %v323 = vor.u32 %v319, %v322
  %v324 = vrot.slane %v323, 4
  %v326 = vshll.u32 %v52, 16
  %v328 = vrot.slane %v326, 5
  %v329 = vsel %vm91, %v324, %v328
  %v331 = vshrl.u32 %v53, 16
  %v333 = vrot.slane %v331, 4
  %v334 = vshll.u32 %v53, 16
  %v336 = vrot.slane %v334, 5
  %v337 = vor.u32 %v333, %v336
  %v338 = vrot.slane %v337, 4
  %v340 = vshll.u32 %v54, 16
  %v342 = vrot.slane %v340, 5
  %v343 = vsel %vm91, %v338, %v342
  %v345 = vshrl.u32 %v55, 16
  %v347 = vrot.slane %v345, 4
  %v348 = vshll.u32 %v55, 16
  %v350 = vrot.slane %v348, 5
  %v351 = vor.u32 %v347, %v350
  %v352 = vrot.slane %v351, 4
  %v354 = vshll.u32 %v56, 16
  %v356 = vrot.slane %v354, 5
  %v357 = vsel %vm91, %v352, %v356
  %v359 = vshrl.u32 %v57, 16
  %v361 = vrot.slane %v359, 4
  %v362 = vshll.u32 %v57, 16
  %v364 = vrot.slane %v362, 5
  %v365 = vor.u32 %v361, %v364
  %v366 = vrot.slane %v365, 4
  %v368 = vshll.u32 %v58, 16
  %v370 = vrot.slane %v368, 5
  %v371 = vsel %vm91, %v366, %v370
  %v373 = vshrl.u32 %v59, 16
  %v375 = vrot.slane %v373, 4
  %v376 = vshll.u32 %v59, 16
  %v378 = vrot.slane %v376, 5
  %v379 = vor.u32 %v375, %v378
  %v380 = vrot.slane %v379, 4
  %v382 = vshll.u32 %v60, 16
  %v384 = vrot.slane %v382, 5
  %v385 = vsel %vm91, %v380, %v384
  %v387 = vshrl.u32 %v61, 16
  %v389 = vrot.slane %v387, 4
  %v390 = vshll.u32 %v61, 16
  %v392 = vrot.slane %v390, 5
  %v393 = vor.u32 %v389, %v392
  %v394 = vrot.slane %v393, 4
  %v396 = vshll.u32 %v62, 16
  %v398 = vrot.slane %v396, 5
  %v399 = vsel %vm91, %v394, %v398
  %v401 = vshrl.u32 %v63, 16
  %v403 = vrot.slane %v401, 4
  %v404 = vshll.u32 %v63, 16
  %v406 = vrot.slane %v404, 5
  %v407 = vor.u32 %v403, %v406
  %v408 = vrot.slane %v407, 4
  %v410 = vshll.u32 %v64, 16
  %v412 = vrot.slane %v410, 5
  %v413 = vsel %vm91, %v408, %v412
  %v415 = vshrl.u32 %v65, 16
  %v417 = vrot.slane %v415, 4
  %v418 = vshll.u32 %v65, 16
  %v420 = vrot.slane %v418, 5
  %v421 = vor.u32 %v417, %v420
  %v422 = vrot.slane %v421, 4
  %v424 = vshll.u32 %v66, 16
  %v426 = vrot.slane %v424, 5
  %v427 = vsel %vm91, %v422, %v426
  %v429 = vshrl.u32 %v69, 16
  %v431 = vrot.slane %v429, 4
  %v432 = vshll.u32 %v69, 16
  %v434 = vrot.slane %v432, 5
  %v435 = vor.u32 %v431, %v434
  %v436 = vrot.slane %v435, 4
  %v438 = vshll.u32 %v70, 16
  %v440 = vrot.slane %v438, 5
  %v441 = vsel %vm91, %v436, %v440
  %v443 = vshrl.u32 %v71, 16
  %v445 = vrot.slane %v443, 4
  %v446 = vshll.u32 %v71, 16
  %v448 = vrot.slane %v446, 5
  %v449 = vor.u32 %v445, %v448
  %v450 = vrot.slane %v449, 4
  %v452 = vshll.u32 %v72, 16
  %v454 = vrot.slane %v452, 5
  %v455 = vsel %vm91, %v450, %v454
  %v457 = vshrl.u32 %v73, 16
  %v459 = vrot.slane %v457, 4
  %v460 = vshll.u32 %v73, 16
  %v462 = vrot.slane %v460, 5
  %v463 = vor.u32 %v459, %v462
  %v464 = vrot.slane %v463, 4
  %v466 = vshll.u32 %v74, 16
  %v468 = vrot.slane %v466, 5
  %v469 = vsel %vm91, %v464, %v468
  %v471 = vshrl.u32 %v75, 16
  %v473 = vrot.slane %v471, 4
  %v474 = vshll.u32 %v75, 16
  %v476 = vrot.slane %v474, 5
  %v477 = vor.u32 %v473, %v476
  %v478 = vrot.slane %v477, 4
  %v480 = vshll.u32 %v76, 16
  %v482 = vrot.slane %v480, 5
  %v483 = vsel %vm91, %v478, %v482
  %v485 = vshrl.u32 %v77, 16
  %v487 = vrot.slane %v485, 4
  %v488 = vshll.u32 %v77, 16
  %v490 = vrot.slane %v488, 5
  %v491 = vor.u32 %v487, %v490
  %v492 = vrot.slane %v491, 4
  %v494 = vshll.u32 %v78, 16
  %v496 = vrot.slane %v494, 5
  %v497 = vsel %vm91, %v492, %v496
  %v499 = vshrl.u32 %v79, 16
  %v501 = vrot.slane %v499, 4
  %v502 = vshll.u32 %v79, 16
  %v504 = vrot.slane %v502, 5
  %v505 = vor.u32 %v501, %v504
  %v506 = vrot.slane %v505, 4
  %v508 = vshll.u32 %v80, 16
  %v510 = vrot.slane %v508, 5
  %v511 = vsel %vm91, %v506, %v510
  %v513 = vshrl.u32 %v81, 16
  %v515 = vrot.slane %v513, 4
  %v516 = vshll.u32 %v81, 16
  %v518 = vrot.slane %v516, 5
  %v519 = vor.u32 %v515, %v518
  %v520 = vrot.slane %v519, 4
  %v522 = vshll.u32 %v82, 16
  %v524 = vrot.slane %v522, 5
  %v525 = vsel %vm91, %v520, %v524
  %v527 = vshrl.u32 %v83, 16
  %v529 = vrot.slane %v527, 4
  %v530 = vshll.u32 %v83, 16
  %v532 = vrot.slane %v530, 5
  %v533 = vor.u32 %v529, %v532
  %v534 = vrot.slane %v533, 4
  %v536 = vshll.u32 %v84, 16
  %v538 = vrot.slane %v536, 5
  %v539 = vsel %vm91, %v534, %v538
  %s540 = scalar_lea.vmem %s1, 8
  %v541 = vld [vmem:[%s540] sm:$0xf]
  %v542 = vld [vmem:[%s540 + $0x4] sm:$0xf]
  %v543 = vunpack.c.l.b16 %v105
  %v544 = vunpack.c.l.b16 %v119
  %v545 = vunpack.c.l.b16 %v133
  %v546 = vunpack.c.l.b16 %v147
  %v547 = vunpack.c.l.b16 %v161
  %v548 = vunpack.c.l.b16 %v175
  %v549 = vunpack.c.l.b16 %v189
  %v550 = vunpack.c.l.b16 %v203
  %v551 = vunpack.c.l.b16 %v217
  %v552 = vunpack.c.l.b16 %v231
  %v553 = vunpack.c.l.b16 %v245
  %v554 = vunpack.c.l.b16 %v259
  %v555 = vunpack.c.l.b16 %v273
  %v556 = vunpack.c.l.b16 %v287
  %v557 = vunpack.c.l.b16 %v301
  %v558 = vunpack.c.l.b16 %v315
  %v559 = vunpack.c.l.b16 %v329
  %v560 = vunpack.c.l.b16 %v343
  %v561 = vunpack.c.l.b16 %v357
  %v562 = vunpack.c.l.b16 %v371
  %v563 = vunpack.c.l.b16 %v385
  %v564 = vunpack.c.l.b16 %v399
  %v565 = vunpack.c.l.b16 %v413
  %v566 = vunpack.c.l.b16 %v427
  %v567 = vunpack.c.l.b16 %v441
  %v568 = vunpack.c.l.b16 %v455
  %v569 = vunpack.c.l.b16 %v469
  %v570 = vunpack.c.l.b16 %v483
  %v571 = vunpack.c.l.b16 %v497
  %v572 = vunpack.c.l.b16 %v511
  %v573 = vunpack.c.l.b16 %v525
  %v574 = vunpack.c.l.b16 %v539
  %v575 = vpack.c.b16 %v544, %v543
  %v576 = vpack.c.b16 %v546, %v545
  %v577 = vpack.c.b16 %v548, %v547
  %v578 = vpack.c.b16 %v550, %v549
  %v579 = vpack.c.b16 %v552, %v551
  %v580 = vpack.c.b16 %v554, %v553
  %v581 = vpack.c.b16 %v556, %v555
  %v582 = vpack.c.b16 %v558, %v557
  %v583 = vpack.c.b16 %v560, %v559
  %v584 = vpack.c.b16 %v562, %v561
  %v585 = vpack.c.b16 %v564, %v563
  %v586 = vpack.c.b16 %v566, %v565
  %v587 = vpack.c.b16 %v568, %v567
  %v588 = vpack.c.b16 %v570, %v569
  %v589 = vpack.c.b16 %v572, %v571
  %v590 = vpack.c.b16 %v574, %v573
  %v593 = vunpack.c.l.b16 %v541
  %v594 = vunpack.c.l.b16 %v542
  %v595 = vpack.c.b16 %v594, %v593
  %vm597 = vcmask 130048
  %v599 = vsel %vm597, %v575, 0
  %v602 = vsel %vm597, %v576, 0
  %v605 = vsel %vm597, %v577, 0
  %v608 = vsel %vm597, %v578, 0
  %v611 = vsel %vm597, %v579, 0
  %v614 = vsel %vm597, %v580, 0
  %v617 = vsel %vm597, %v581, 0
  %v620 = vsel %vm597, %v582, 0
  %v623 = vsel %vm597, %v583, 0
  %v626 = vsel %vm597, %v584, 0
  %v629 = vsel %vm597, %v585, 0
  %v632 = vsel %vm597, %v586, 0
  %v635 = vsel %vm597, %v587, 0
  %v638 = vsel %vm597, %v588, 0
  %v641 = vsel %vm597, %v589, 0
  %v644 = vsel %vm597, %v590, 0
  %646 = vmatprep.subr.bf16.mxu0 0
  %647 = vmatpush1.bf16.msra.mxu0 0
  %648 = vmatprep.subr.bf16.mxu0 0
  %649 = vmatpush1.bf16.msra.mxu0 0
  %650 = vmatprep.subr.bf16.mxu0 0
  %651 = vmatpush1.bf16.msra.mxu0 0
  %652 = vmatprep.subr.bf16.mxu0 0
  %653 = vmatpush1.bf16.msra.mxu0 0
  %654 = vmatprep.subr.bf16.mxu0 0
  %655 = vmatpush1.bf16.msra.mxu0 0
  %656 = vmatprep.subr.bf16.mxu0 0
  %657 = vmatpush1.bf16.msra.mxu0 0
  %658 = vmatprep.subr.bf16.mxu0 0
  %659 = vmatpush1.bf16.msra.mxu0 0
  %660 = vmatprep.subr.bf16.mxu0 0
  %661 = vmatpush1.bf16.msra.mxu0 %v595
  %662 = vmatprep.subr.bf16.mxu0 0
  %663 = vmatpush2.bf16.msra.mxu0 0
  %664 = vmatprep.subr.bf16.mxu0 0
  %665 = vmatpush2.bf16.msra.mxu0 0
  %666 = vmatprep.subr.bf16.mxu0 0
  %667 = vmatpush2.bf16.msra.mxu0 0
  %668 = vmatprep.subr.bf16.mxu0 0
  %669 = vmatpush2.bf16.msra.mxu0 0
  %670 = vmatprep.subr.bf16.mxu0 0
  %671 = vmatpush2.bf16.msra.mxu0 0
  %672 = vmatprep.subr.bf16.mxu0 0
  %673 = vmatpush2.bf16.msra.mxu0 0
  %674 = vmatprep.subr.bf16.mxu0 0
  %675 = vmatpush2.bf16.msra.mxu0 0
  %676 = vmatprep.subr.bf16.mxu0 0
  %677 = vmatpush2.bf16.msra.mxu0 0
  %678 = vmatprep.mubr.bf16.mxu0 0
  %679 = vmatmul.mubr.bf16.gmra.mxu0 %v599
  %v680 = vpop.f32.mrf.mxu0
  %v681 = vadd.f32 0.0, %v680
  %v682 = vpop.f32.mrf.mxu0
  %v683 = vpop.f32.mrf.mxu0
  %v684 = vadd.f32 0.0, %v683
  %v685 = vpop.f32.mrf.mxu0
  %686 = vmatprep.mubr.bf16.mxu0 0
  %687 = vmatmul.mubr.bf16.gmra.mxu0 %v602
  %v688 = vpop.f32.mrf.mxu0
  %v689 = vadd.f32 0.0, %v688
  %v690 = vpop.f32.mrf.mxu0
  %v691 = vpop.f32.mrf.mxu0
  %v692 = vadd.f32 0.0, %v691
  %v693 = vpop.f32.mrf.mxu0
  %694 = vmatprep.mubr.bf16.mxu0 0
  %695 = vmatmul.mubr.bf16.gmra.mxu0 %v605
  %v696 = vpop.f32.mrf.mxu0
  %v697 = vadd.f32 0.0, %v696
  %v698 = vpop.f32.mrf.mxu0
  %v699 = vpop.f32.mrf.mxu0
  %v700 = vadd.f32 0.0, %v699
  %v701 = vpop.f32.mrf.mxu0
  %702 = vmatprep.mubr.bf16.mxu0 0
  %703 = vmatmul.mubr.bf16.gmra.mxu0 %v608
  %v704 = vpop.f32.mrf.mxu0
  %v705 = vadd.f32 0.0, %v704
  %v706 = vpop.f32.mrf.mxu0
  %v707 = vpop.f32.mrf.mxu0
  %v708 = vadd.f32 0.0, %v707
  %v709 = vpop.f32.mrf.mxu0
  %710 = vmatprep.mubr.bf16.mxu0 0
  %711 = vmatmul.mubr.bf16.gmra.mxu0 %v611
  %v712 = vpop.f32.mrf.mxu0
  %v713 = vadd.f32 0.0, %v712
  %v714 = vpop.f32.mrf.mxu0
  %v715 = vpop.f32.mrf.mxu0
  %v716 = vadd.f32 0.0, %v715
  %v717 = vpop.f32.mrf.mxu0
  %718 = vmatprep.mubr.bf16.mxu0 0
  %719 = vmatmul.mubr.bf16.gmra.mxu0 %v614
  %v720 = vpop.f32.mrf.mxu0
  %v721 = vadd.f32 0.0, %v720
  %v722 = vpop.f32.mrf.mxu0
  %v723 = vpop.f32.mrf.mxu0
  %v724 = vadd.f32 0.0, %v723
  %v725 = vpop.f32.mrf.mxu0
  %726 = vmatprep.mubr.bf16.mxu0 0
  %727 = vmatmul.mubr.bf16.gmra.mxu0 %v617
  %v728 = vpop.f32.mrf.mxu0
  %v729 = vadd.f32 0.0, %v728
  %v730 = vpop.f32.mrf.mxu0
  %v731 = vpop.f32.mrf.mxu0
  %v732 = vadd.f32 0.0, %v731
  %v733 = vpop.f32.mrf.mxu0
  %734 = vmatprep.mubr.bf16.mxu0 0
  %735 = vmatmul.mubr.bf16.gmra.mxu0 %v620
  %v736 = vpop.f32.mrf.mxu0
  %v737 = vadd.f32 0.0, %v736
  %v738 = vpop.f32.mrf.mxu0
  %v739 = vpop.f32.mrf.mxu0
  %v740 = vadd.f32 0.0, %v739
  %v741 = vpop.f32.mrf.mxu0
  %742 = vmatprep.mubr.bf16.mxu0 0
  %743 = vmatmul.mubr.bf16.gmra.mxu0 %v623
  %v744 = vpop.f32.mrf.mxu0
  %v745 = vadd.f32 0.0, %v744
  %v746 = vpop.f32.mrf.mxu0
  %v747 = vpop.f32.mrf.mxu0
  %v748 = vadd.f32 0.0, %v747
  %v749 = vpop.f32.mrf.mxu0
  %750 = vmatprep.mubr.bf16.mxu0 0
  %751 = vmatmul.mubr.bf16.gmra.mxu0 %v626
  %v752 = vpop.f32.mrf.mxu0
  %v753 = vadd.f32 0.0, %v752
  %v754 = vpop.f32.mrf.mxu0
  %v755 = vpop.f32.mrf.mxu0
  %v756 = vadd.f32 0.0, %v755
  %v757 = vpop.f32.mrf.mxu0
  %758 = vmatprep.mubr.bf16.mxu0 0
  %759 = vmatmul.mubr.bf16.gmra.mxu0 %v629
  %v760 = vpop.f32.mrf.mxu0
  %v761 = vadd.f32 0.0, %v760
  %v762 = vpop.f32.mrf.mxu0
  %v763 = vpop.f32.mrf.mxu0
  %v764 = vadd.f32 0.0, %v763
  %v765 = vpop.f32.mrf.mxu0
  %766 = vmatprep.mubr.bf16.mxu0 0
  %767 = vmatmul.mubr.bf16.gmra.mxu0 %v632
  %v768 = vpop.f32.mrf.mxu0
  %v769 = vadd.f32 0.0, %v768
  %v770 = vpop.f32.mrf.mxu0
  %v771 = vpop.f32.mrf.mxu0
  %v772 = vadd.f32 0.0, %v771
  %v773 = vpop.f32.mrf.mxu0
  %774 = vmatprep.mubr.bf16.mxu0 0
  %775 = vmatmul.mubr.bf16.gmra.mxu0 %v635
  %v776 = vpop.f32.mrf.mxu0
  %v777 = vadd.f32 0.0, %v776
  %v778 = vpop.f32.mrf.mxu0
  %v779 = vpop.f32.mrf.mxu0
  %v780 = vadd.f32 0.0, %v779
  %v781 = vpop.f32.mrf.mxu0
  %782 = vmatprep.mubr.bf16.mxu0 0
  %783 = vmatmul.mubr.bf16.gmra.mxu0 %v638
  %v784 = vpop.f32.mrf.mxu0
  %v785 = vadd.f32 0.0, %v784
  %v786 = vpop.f32.mrf.mxu0
  %v787 = vpop.f32.mrf.mxu0
  %v788 = vadd.f32 0.0, %v787
  %v789 = vpop.f32.mrf.mxu0
  %790 = vmatprep.mubr.bf16.mxu0 0
  %791 = vmatmul.mubr.bf16.gmra.mxu0 %v641
  %v792 = vpop.f32.mrf.mxu0
  %v793 = vadd.f32 0.0, %v792
  %v794 = vpop.f32.mrf.mxu0
  %v795 = vpop.f32.mrf.mxu0
  %v796 = vadd.f32 0.0, %v795
  %v797 = vpop.f32.mrf.mxu0
  %798 = vmatprep.mubr.bf16.mxu0 0
  %799 = vmatmul.mubr.bf16.gmra.mxu0 %v644
  %v800 = vpop.f32.mrf.mxu0
  %v801 = vadd.f32 0.0, %v800
  %v802 = vpop.f32.mrf.mxu0
  %v803 = vpop.f32.mrf.mxu0
  %v804 = vadd.f32 0.0, %v803
  %v805 = vpop.f32.mrf.mxu0
  %806 = vdwg.mxu0
  %v839 = vunpack.c.l.b16 %v15
  %v840 = vunpack.c.l.b16 %v17
  %v841 = vunpack.c.l.b16 %v19
  %v842 = vunpack.c.l.b16 %v21
  %v843 = vunpack.c.l.b16 %v23
  %v844 = vunpack.c.l.b16 %v25
  %v845 = vunpack.c.l.b16 %v27
  %v846 = vunpack.c.l.b16 %v29
  %v847 = vunpack.c.l.b16 %v33
  %v848 = vunpack.c.l.b16 %v35
  %v849 = vunpack.c.l.b16 %v37
  %v850 = vunpack.c.l.b16 %v39
  %v851 = vunpack.c.l.b16 %v41
  %v852 = vunpack.c.l.b16 %v43
  %v853 = vunpack.c.l.b16 %v45
  %v854 = vunpack.c.l.b16 %v47
  %v855 = vunpack.c.l.b16 %v51
  %v856 = vunpack.c.l.b16 %v53
  %v857 = vunpack.c.l.b16 %v55
  %v858 = vunpack.c.l.b16 %v57
  %v859 = vunpack.c.l.b16 %v59
  %v860 = vunpack.c.l.b16 %v61
  %v861 = vunpack.c.l.b16 %v63
  %v862 = vunpack.c.l.b16 %v65
  %v863 = vunpack.c.l.b16 %v69
  %v864 = vunpack.c.l.b16 %v71
  %v865 = vunpack.c.l.b16 %v73
  %v866 = vunpack.c.l.b16 %v75
  %v867 = vunpack.c.l.b16 %v77
  %v868 = vunpack.c.l.b16 %v79
  %v869 = vunpack.c.l.b16 %v81
  %v870 = vunpack.c.l.b16 %v83
  %v871 = vpack.c.b16 %v840, %v839
  %v872 = vpack.c.b16 %v842, %v841
  %v873 = vpack.c.b16 %v844, %v843
  %v874 = vpack.c.b16 %v846, %v845
  %v875 = vpack.c.b16 %v848, %v847
  %v876 = vpack.c.b16 %v850, %v849
  %v877 = vpack.c.b16 %v852, %v851
  %v878 = vpack.c.b16 %v854, %v853
  %v879 = vpack.c.b16 %v856, %v855
  %v880 = vpack.c.b16 %v858, %v857
  %v881 = vpack.c.b16 %v860, %v859
  %v882 = vpack.c.b16 %v862, %v861
  %v883 = vpack.c.b16 %v864, %v863
  %v884 = vpack.c.b16 %v866, %v865
  %v885 = vpack.c.b16 %v868, %v867
  %v886 = vpack.c.b16 %v870, %v869
  %v889 = vunpack.c.l.b16 %v87
  %v890 = vunpack.c.l.b16 %v88
  %v891 = vpack.c.b16 %v890, %v889
  %v894 = vsel %vm597, %v871, 0
  %v897 = vsel %vm597, %v872, 0
  %v900 = vsel %vm597, %v873, 0
  %v903 = vsel %vm597, %v874, 0
  %v906 = vsel %vm597, %v875, 0
  %v909 = vsel %vm597, %v876, 0
  %v912 = vsel %vm597, %v877, 0
  %v915 = vsel %vm597, %v878, 0
  %v918 = vsel %vm597, %v879, 0
  %v921 = vsel %vm597, %v880, 0
  %v924 = vsel %vm597, %v881, 0
  %v927 = vsel %vm597, %v882, 0
  %v930 = vsel %vm597, %v883, 0
  %v933 = vsel %vm597, %v884, 0
  %v936 = vsel %vm597, %v885, 0
  %v939 = vsel %vm597, %v886, 0
  %941 = vmatprep.subr.bf16.mxu0 0
  %942 = vmatpush1.bf16.msra.mxu0 0
  %943 = vmatprep.subr.bf16.mxu0 0
  %944 = vmatpush1.bf16.msra.mxu0 0
  %945 = vmatprep.subr.bf16.mxu0 0
  %946 = vmatpush1.bf16.msra.mxu0 0
  %947 = vmatprep.subr.bf16.mxu0 0
  %948 = vmatpush1.bf16.msra.mxu0 0
  %949 = vmatprep.subr.bf16.mxu0 0
  %950 = vmatpush1.bf16.msra.mxu0 0
  %951 = vmatprep.subr.bf16.mxu0 0
  %952 = vmatpush1.bf16.msra.mxu0 0
  %953 = vmatprep.subr.bf16.mxu0 0
  %954 = vmatpush1.bf16.msra.mxu0 0
  %955 = vmatprep.subr.bf16.mxu0 0
  %956 = vmatpush1.bf16.msra.mxu0 %v891
  %957 = vmatprep.subr.bf16.mxu0 0
  %958 = vmatpush2.bf16.msra.mxu0 0
  %959 = vmatprep.subr.bf16.mxu0 0
  %960 = vmatpush2.bf16.msra.mxu0 0
  %961 = vmatprep.subr.bf16.mxu0 0
  %962 = vmatpush2.bf16.msra.mxu0 0
  %963 = vmatprep.subr.bf16.mxu0 0
  %964 = vmatpush2.bf16.msra.mxu0 0
  %965 = vmatprep.subr.bf16.mxu0 0
  %966 = vmatpush2.bf16.msra.mxu0 0
  %967 = vmatprep.subr.bf16.mxu0 0
  %968 = vmatpush2.bf16.msra.mxu0 0
  %969 = vmatprep.subr.bf16.mxu0 0
  %970 = vmatpush2.bf16.msra.mxu0 0
  %971 = vmatprep.subr.bf16.mxu0 0
  %972 = vmatpush2.bf16.msra.mxu0 0
  %973 = vmatprep.mubr.bf16.mxu0 0
  %974 = vmatmul.mubr.bf16.gmra.mxu0 %v894
  %v975 = vpop.f32.mrf.mxu0
  %v976 = vadd.f32 %v681, %v975
  %v977 = vpop.f32.mrf.mxu0
  %v978 = vpop.f32.mrf.mxu0
  %v979 = vadd.f32 %v684, %v978
  %v980 = vpop.f32.mrf.mxu0
  %981 = vmatprep.mubr.bf16.mxu0 0
  %982 = vmatmul.mubr.bf16.gmra.mxu0 %v897
  %v983 = vpop.f32.mrf.mxu0
  %v984 = vadd.f32 %v689, %v983
  %v985 = vpop.f32.mrf.mxu0
  %v986 = vpop.f32.mrf.mxu0
  %v987 = vadd.f32 %v692, %v986
  %v988 = vpop.f32.mrf.mxu0
  %989 = vmatprep.mubr.bf16.mxu0 0
  %990 = vmatmul.mubr.bf16.gmra.mxu0 %v900
  %v991 = vpop.f32.mrf.mxu0
  %v992 = vadd.f32 %v697, %v991
  %v993 = vpop.f32.mrf.mxu0
  %v994 = vpop.f32.mrf.mxu0
  %v995 = vadd.f32 %v700, %v994
  %v996 = vpop.f32.mrf.mxu0
  %997 = vmatprep.mubr.bf16.mxu0 0
  %998 = vmatmul.mubr.bf16.gmra.mxu0 %v903
  %v999 = vpop.f32.mrf.mxu0
  %v1000 = vadd.f32 %v705, %v999
  %v1001 = vpop.f32.mrf.mxu0
  %v1002 = vpop.f32.mrf.mxu0
  %v1003 = vadd.f32 %v708, %v1002
  %v1004 = vpop.f32.mrf.mxu0
  %1005 = vmatprep.mubr.bf16.mxu0 0
  %1006 = vmatmul.mubr.bf16.gmra.mxu0 %v906
  %v1007 = vpop.f32.mrf.mxu0
  %v1008 = vadd.f32 %v713, %v1007
  %v1009 = vpop.f32.mrf.mxu0
  %v1010 = vpop.f32.mrf.mxu0
  %v1011 = vadd.f32 %v716, %v1010
  %v1012 = vpop.f32.mrf.mxu0
  %1013 = vmatprep.mubr.bf16.mxu0 0
  %1014 = vmatmul.mubr.bf16.gmra.mxu0 %v909
  %v1015 = vpop.f32.mrf.mxu0
  %v1016 = vadd.f32 %v721, %v1015
  %v1017 = vpop.f32.mrf.mxu0
  %v1018 = vpop.f32.mrf.mxu0
  %v1019 = vadd.f32 %v724, %v1018
  %v1020 = vpop.f32.mrf.mxu0
  %1021 = vmatprep.mubr.bf16.mxu0 0
  %1022 = vmatmul.mubr.bf16.gmra.mxu0 %v912
  %v1023 = vpop.f32.mrf.mxu0
  %v1024 = vadd.f32 %v729, %v1023
  %v1025 = vpop.f32.mrf.mxu0
  %v1026 = vpop.f32.mrf.mxu0
  %v1027 = vadd.f32 %v732, %v1026
  %v1028 = vpop.f32.mrf.mxu0
  %1029 = vmatprep.mubr.bf16.mxu0 0
  %1030 = vmatmul.mubr.bf16.gmra.mxu0 %v915
  %v1031 = vpop.f32.mrf.mxu0
  %v1032 = vadd.f32 %v737, %v1031
  %v1033 = vpop.f32.mrf.mxu0
  %v1034 = vpop.f32.mrf.mxu0
  %v1035 = vadd.f32 %v740, %v1034
  %v1036 = vpop.f32.mrf.mxu0
  %1037 = vmatprep.mubr.bf16.mxu0 0
  %1038 = vmatmul.mubr.bf16.gmra.mxu0 %v918
  %v1039 = vpop.f32.mrf.mxu0
  %v1040 = vadd.f32 %v745, %v1039
  %v1041 = vpop.f32.mrf.mxu0
  %v1042 = vpop.f32.mrf.mxu0
  %v1043 = vadd.f32 %v748, %v1042
  %v1044 = vpop.f32.mrf.mxu0
  %1045 = vmatprep.mubr.bf16.mxu0 0
  %1046 = vmatmul.mubr.bf16.gmra.mxu0 %v921
  %v1047 = vpop.f32.mrf.mxu0
  %v1048 = vadd.f32 %v753, %v1047
  %v1049 = vpop.f32.mrf.mxu0
  %v1050 = vpop.f32.mrf.mxu0
  %v1051 = vadd.f32 %v756, %v1050
  %v1052 = vpop.f32.mrf.mxu0
  %1053 = vmatprep.mubr.bf16.mxu0 0
  %1054 = vmatmul.mubr.bf16.gmra.mxu0 %v924
  %v1055 = vpop.f32.mrf.mxu0
  %v1056 = vadd.f32 %v761, %v1055
  %v1057 = vpop.f32.mrf.mxu0
  %v1058 = vpop.f32.mrf.mxu0
  %v1059 = vadd.f32 %v764, %v1058
  %v1060 = vpop.f32.mrf.mxu0
  %1061 = vmatprep.mubr.bf16.mxu0 0
  %1062 = vmatmul.mubr.bf16.gmra.mxu0 %v927
  %v1063 = vpop.f32.mrf.mxu0
  %v1064 = vadd.f32 %v769, %v1063
  %v1065 = vpop.f32.mrf.mxu0
  %v1066 = vpop.f32.mrf.mxu0
  %v1067 = vadd.f32 %v772, %v1066
  %v1068 = vpop.f32.mrf.mxu0
  %1069 = vmatprep.mubr.bf16.mxu0 0
  %1070 = vmatmul.mubr.bf16.gmra.mxu0 %v930
  %v1071 = vpop.f32.mrf.mxu0
  %v1072 = vadd.f32 %v777, %v1071
  %v1073 = vpop.f32.mrf.mxu0
  %v1074 = vpop.f32.mrf.mxu0
  %v1075 = vadd.f32 %v780, %v1074
  %v1076 = vpop.f32.mrf.mxu0
  %1077 = vmatprep.mubr.bf16.mxu0 0
  %1078 = vmatmul.mubr.bf16.gmra.mxu0 %v933
  %v1079 = vpop.f32.mrf.mxu0
  %v1080 = vadd.f32 %v785, %v1079
  %v1081 = vpop.f32.mrf.mxu0
  %v1082 = vpop.f32.mrf.mxu0
  %v1083 = vadd.f32 %v788, %v1082
  %v1084 = vpop.f32.mrf.mxu0
  %1085 = vmatprep.mubr.bf16.mxu0 0
  %1086 = vmatmul.mubr.bf16.gmra.mxu0 %v936
  %v1087 = vpop.f32.mrf.mxu0
  %v1088 = vadd.f32 %v793, %v1087
  %v1089 = vpop.f32.mrf.mxu0
  %v1090 = vpop.f32.mrf.mxu0
  %v1091 = vadd.f32 %v796, %v1090
  %v1092 = vpop.f32.mrf.mxu0
  %1093 = vmatprep.mubr.bf16.mxu0 0
  %1094 = vmatmul.mubr.bf16.gmra.mxu0 %v939
  %v1095 = vpop.f32.mrf.mxu0
  %v1096 = vadd.f32 %v801, %v1095
  %v1097 = vpop.f32.mrf.mxu0
  %v1098 = vpop.f32.mrf.mxu0
  %v1099 = vadd.f32 %v804, %v1098
  %v1100 = vpop.f32.mrf.mxu0
  %1101 = vdwg.mxu0
  %s1102 = scalar_lea.vmem %s1, 16
  %v1103 = vld [vmem:[%s1102] sm:$0xf]
  %v1104 = vld [vmem:[%s1102 + $0x4] sm:$0xf]
  %v1109 = vunpack.c.l.b16 %v31
  %v1110 = vunpack.c.l.b16 %v49
  %v1111 = vunpack.c.l.b16 %v67
  %v1112 = vunpack.c.l.b16 %v85
  %v1113 = vpack.c.b16 %v841, %v840
  %v1114 = vpack.c.b16 %v843, %v842
  %v1115 = vpack.c.b16 %v845, %v844
  %v1116 = vpack.c.b16 %v1109, %v846
  %v1117 = vpack.c.b16 %v849, %v848
  %v1118 = vpack.c.b16 %v851, %v850
  %v1119 = vpack.c.b16 %v853, %v852
  %v1120 = vpack.c.b16 %v1110, %v854
  %v1121 = vpack.c.b16 %v857, %v856
  %v1122 = vpack.c.b16 %v859, %v858
  %v1123 = vpack.c.b16 %v861, %v860
  %v1124 = vpack.c.b16 %v1111, %v862
  %v1125 = vpack.c.b16 %v865, %v864
  %v1126 = vpack.c.b16 %v867, %v866
  %v1127 = vpack.c.b16 %v869, %v868
  %v1128 = vpack.c.b16 %v1112, %v870
  %v1131 = vunpack.c.l.b16 %v1103
  %v1132 = vunpack.c.l.b16 %v1104
  %v1133 = vpack.c.b16 %v1132, %v1131
  %v1136 = vsel %vm597, %v1113, 0
  %v1139 = vsel %vm597, %v1114, 0
  %v1142 = vsel %vm597, %v1115, 0
  %v1145 = vsel %vm597, %v1116, 0
  %v1148 = vsel %vm597, %v1117, 0
  %v1151 = vsel %vm597, %v1118, 0
  %v1154 = vsel %vm597, %v1119, 0
  %v1157 = vsel %vm597, %v1120, 0
  %v1160 = vsel %vm597, %v1121, 0
  %v1163 = vsel %vm597, %v1122, 0
  %v1166 = vsel %vm597, %v1123, 0
  %v1169 = vsel %vm597, %v1124, 0
  %v1172 = vsel %vm597, %v1125, 0
  %v1175 = vsel %vm597, %v1126, 0
  %v1178 = vsel %vm597, %v1127, 0
  %v1181 = vsel %vm597, %v1128, 0
  %1183 = vmatprep.subr.bf16.mxu0 0
  %1184 = vmatpush1.bf16.msra.mxu0 0
  %1185 = vmatprep.subr.bf16.mxu0 0
  %1186 = vmatpush1.bf16.msra.mxu0 0
  %1187 = vmatprep.subr.bf16.mxu0 0
  %1188 = vmatpush1.bf16.msra.mxu0 0
  %1189 = vmatprep.subr.bf16.mxu0 0
  %1190 = vmatpush1.bf16.msra.mxu0 0
  %1191 = vmatprep.subr.bf16.mxu0 0
  %1192 = vmatpush1.bf16.msra.mxu0 0
  %1193 = vmatprep.subr.bf16.mxu0 0
  %1194 = vmatpush1.bf16.msra.mxu0 0
  %1195 = vmatprep.subr.bf16.mxu0 0
  %1196 = vmatpush1.bf16.msra.mxu0 0
  %1197 = vmatprep.subr.bf16.mxu0 0
  %1198 = vmatpush1.bf16.msra.mxu0 %v1133
  %1199 = vmatprep.subr.bf16.mxu0 0
  %1200 = vmatpush2.bf16.msra.mxu0 0
  %1201 = vmatprep.subr.bf16.mxu0 0
  %1202 = vmatpush2.bf16.msra.mxu0 0
  %1203 = vmatprep.subr.bf16.mxu0 0
  %1204 = vmatpush2.bf16.msra.mxu0 0
  %1205 = vmatprep.subr.bf16.mxu0 0
  %1206 = vmatpush2.bf16.msra.mxu0 0
  %1207 = vmatprep.subr.bf16.mxu0 0
  %1208 = vmatpush2.bf16.msra.mxu0 0
  %1209 = vmatprep.subr.bf16.mxu0 0
  %1210 = vmatpush2.bf16.msra.mxu0 0
  %1211 = vmatprep.subr.bf16.mxu0 0
  %1212 = vmatpush2.bf16.msra.mxu0 0
  %1213 = vmatprep.subr.bf16.mxu0 0
  %1214 = vmatpush2.bf16.msra.mxu0 0
  %1215 = vmatprep.mubr.bf16.mxu0 0
  %1216 = vmatmul.mubr.bf16.gmra.mxu0 %v1136
  %v1217 = vpop.f32.mrf.mxu0
  %v1218 = vadd.f32 0.0, %v1217
  %v1219 = vpop.f32.mrf.mxu0
  %v1220 = vpop.f32.mrf.mxu0
  %v1221 = vadd.f32 0.0, %v1220
  %v1222 = vpop.f32.mrf.mxu0
  %1223 = vmatprep.mubr.bf16.mxu0 0
  %1224 = vmatmul.mubr.bf16.gmra.mxu0 %v1139
  %v1225 = vpop.f32.mrf.mxu0
  %v1226 = vadd.f32 0.0, %v1225
  %v1227 = vpop.f32.mrf.mxu0
  %v1228 = vpop.f32.mrf.mxu0
  %v1229 = vadd.f32 0.0, %v1228
  %v1230 = vpop.f32.mrf.mxu0
  %1231 = vmatprep.mubr.bf16.mxu0 0
  %1232 = vmatmul.mubr.bf16.gmra.mxu0 %v1142
  %v1233 = vpop.f32.mrf.mxu0
  %v1234 = vadd.f32 0.0, %v1233
  %v1235 = vpop.f32.mrf.mxu0
  %v1236 = vpop.f32.mrf.mxu0
  %v1237 = vadd.f32 0.0, %v1236
  %v1238 = vpop.f32.mrf.mxu0
  %1239 = vmatprep.mubr.bf16.mxu0 0
  %1240 = vmatmul.mubr.bf16.gmra.mxu0 %v1145
  %v1241 = vpop.f32.mrf.mxu0
  %v1242 = vadd.f32 0.0, %v1241
  %v1243 = vpop.f32.mrf.mxu0
  %v1244 = vpop.f32.mrf.mxu0
  %v1245 = vadd.f32 0.0, %v1244
  %v1246 = vpop.f32.mrf.mxu0
  %1247 = vmatprep.mubr.bf16.mxu0 0
  %1248 = vmatmul.mubr.bf16.gmra.mxu0 %v1148
  %v1249 = vpop.f32.mrf.mxu0
  %v1250 = vadd.f32 0.0, %v1249
  %v1251 = vpop.f32.mrf.mxu0
  %v1252 = vpop.f32.mrf.mxu0
  %v1253 = vadd.f32 0.0, %v1252
  %v1254 = vpop.f32.mrf.mxu0
  %1255 = vmatprep.mubr.bf16.mxu0 0
  %1256 = vmatmul.mubr.bf16.gmra.mxu0 %v1151
  %v1257 = vpop.f32.mrf.mxu0
  %v1258 = vadd.f32 0.0, %v1257
  %v1259 = vpop.f32.mrf.mxu0
  %v1260 = vpop.f32.mrf.mxu0
  %v1261 = vadd.f32 0.0, %v1260
  %v1262 = vpop.f32.mrf.mxu0
  %1263 = vmatprep.mubr.bf16.mxu0 0
  %1264 = vmatmul.mubr.bf16.gmra.mxu0 %v1154
  %v1265 = vpop.f32.mrf.mxu0
  %v1266 = vadd.f32 0.0, %v1265
  %v1267 = vpop.f32.mrf.mxu0
  %v1268 = vpop.f32.mrf.mxu0
  %v1269 = vadd.f32 0.0, %v1268
  %v1270 = vpop.f32.mrf.mxu0
  %1271 = vmatprep.mubr.bf16.mxu0 0
  %1272 = vmatmul.mubr.bf16.gmra.mxu0 %v1157
  %v1273 = vpop.f32.mrf.mxu0
  %v1274 = vadd.f32 0.0, %v1273
  %v1275 = vpop.f32.mrf.mxu0
  %v1276 = vpop.f32.mrf.mxu0
  %v1277 = vadd.f32 0.0, %v1276
  %v1278 = vpop.f32.mrf.mxu0
  %1279 = vmatprep.mubr.bf16.mxu0 0
  %1280 = vmatmul.mubr.bf16.gmra.mxu0 %v1160
  %v1281 = vpop.f32.mrf.mxu0
  %v1282 = vadd.f32 0.0, %v1281
  %v1283 = vpop.f32.mrf.mxu0
  %v1284 = vpop.f32.mrf.mxu0
  %v1285 = vadd.f32 0.0, %v1284
  %v1286 = vpop.f32.mrf.mxu0
  %1287 = vmatprep.mubr.bf16.mxu0 0
  %1288 = vmatmul.mubr.bf16.gmra.mxu0 %v1163
  %v1289 = vpop.f32.mrf.mxu0
  %v1290 = vadd.f32 0.0, %v1289
  %v1291 = vpop.f32.mrf.mxu0
  %v1292 = vpop.f32.mrf.mxu0
  %v1293 = vadd.f32 0.0, %v1292
  %v1294 = vpop.f32.mrf.mxu0
  %1295 = vmatprep.mubr.bf16.mxu0 0
  %1296 = vmatmul.mubr.bf16.gmra.mxu0 %v1166
  %v1297 = vpop.f32.mrf.mxu0
  %v1298 = vadd.f32 0.0, %v1297
  %v1299 = vpop.f32.mrf.mxu0
  %v1300 = vpop.f32.mrf.mxu0
  %v1301 = vadd.f32 0.0, %v1300
  %v1302 = vpop.f32.mrf.mxu0
  %1303 = vmatprep.mubr.bf16.mxu0 0
  %1304 = vmatmul.mubr.bf16.gmra.mxu0 %v1169
  %v1305 = vpop.f32.mrf.mxu0
  %v1306 = vadd.f32 0.0, %v1305
  %v1307 = vpop.f32.mrf.mxu0
  %v1308 = vpop.f32.mrf.mxu0
  %v1309 = vadd.f32 0.0, %v1308
  %v1310 = vpop.f32.mrf.mxu0
  %1311 = vmatprep.mubr.bf16.mxu0 0
  %1312 = vmatmul.mubr.bf16.gmra.mxu0 %v1172
  %v1313 = vpop.f32.mrf.mxu0
  %v1314 = vadd.f32 0.0, %v1313
  %v1315 = vpop.f32.mrf.mxu0
  %v1316 = vpop.f32.mrf.mxu0
  %v1317 = vadd.f32 0.0, %v1316
  %v1318 = vpop.f32.mrf.mxu0
  %1319 = vmatprep.mubr.bf16.mxu0 0
  %1320 = vmatmul.mubr.bf16.gmra.mxu0 %v1175
  %v1321 = vpop.f32.mrf.mxu0
  %v1322 = vadd.f32 0.0, %v1321
  %v1323 = vpop.f32.mrf.mxu0
  %v1324 = vpop.f32.mrf.mxu0
  %v1325 = vadd.f32 0.0, %v1324
  %v1326 = vpop.f32.mrf.mxu0
  %1327 = vmatprep.mubr.bf16.mxu0 0
  %1328 = vmatmul.mubr.bf16.gmra.mxu0 %v1178
  %v1329 = vpop.f32.mrf.mxu0
  %v1330 = vadd.f32 0.0, %v1329
  %v1331 = vpop.f32.mrf.mxu0
  %v1332 = vpop.f32.mrf.mxu0
  %v1333 = vadd.f32 0.0, %v1332
  %v1334 = vpop.f32.mrf.mxu0
  %1335 = vmatprep.mubr.bf16.mxu0 0
  %1336 = vmatmul.mubr.bf16.gmra.mxu0 %v1181
  %v1337 = vpop.f32.mrf.mxu0
  %v1338 = vadd.f32 0.0, %v1337
  %v1339 = vpop.f32.mrf.mxu0
  %v1340 = vpop.f32.mrf.mxu0
  %v1341 = vadd.f32 0.0, %v1340
  %v1342 = vpop.f32.mrf.mxu0
  %1343 = vdwg.mxu0
  %v1344 = vadd.f32 %v976, %v1218
  %v1345 = vadd.f32 %v979, %v1221
  %v1346 = vadd.f32 %v984, %v1226
  %v1347 = vadd.f32 %v987, %v1229
  %v1348 = vadd.f32 %v992, %v1234
  %v1349 = vadd.f32 %v995, %v1237
  %v1350 = vadd.f32 %v1000, %v1242
  %v1351 = vadd.f32 %v1003, %v1245
  %v1352 = vadd.f32 %v1008, %v1250
  %v1353 = vadd.f32 %v1011, %v1253
  %v1354 = vadd.f32 %v1016, %v1258
  %v1355 = vadd.f32 %v1019, %v1261
  %v1356 = vadd.f32 %v1024, %v1266
  %v1357 = vadd.f32 %v1027, %v1269
  %v1358 = vadd.f32 %v1032, %v1274
  %v1359 = vadd.f32 %v1035, %v1277
  %v1360 = vadd.f32 %v1040, %v1282
  %v1361 = vadd.f32 %v1043, %v1285
  %v1362 = vadd.f32 %v1048, %v1290
  %v1363 = vadd.f32 %v1051, %v1293
  %v1364 = vadd.f32 %v1056, %v1298
  %v1365 = vadd.f32 %v1059, %v1301
  %v1366 = vadd.f32 %v1064, %v1306
  %v1367 = vadd.f32 %v1067, %v1309
  %v1368 = vadd.f32 %v1072, %v1314
  %v1369 = vadd.f32 %v1075, %v1317
  %v1370 = vadd.f32 %v1080, %v1322
  %v1371 = vadd.f32 %v1083, %v1325
  %v1372 = vadd.f32 %v1088, %v1330
  %v1373 = vadd.f32 %v1091, %v1333
  %v1374 = vadd.f32 %v1096, %v1338
  %v1375 = vadd.f32 %v1099, %v1341
  %v1377 = vshrl.u32 %v31, 16
  %v1379 = vrot.slane %v1377, 4
  %v1380 = vshll.u32 %v31, 16
  %v1382 = vrot.slane %v1380, 5
  %v1383 = vor.u32 %v1379, %v1382
  %v1384 = vrot.slane %v1383, 4
  %v1386 = vshll.u32 %v32, 16
  %v1388 = vrot.slane %v1386, 5
  %v1389 = vsel %vm91, %v1384, %v1388
  %v1391 = vshrl.u32 %v49, 16
  %v1393 = vrot.slane %v1391, 4
  %v1394 = vshll.u32 %v49, 16
  %v1396 = vrot.slane %v1394, 5
  %v1397 = vor.u32 %v1393, %v1396
  %v1398 = vrot.slane %v1397, 4
  %v1400 = vshll.u32 %v50, 16
  %v1402 = vrot.slane %v1400, 5
  %v1403 = vsel %vm91, %v1398, %v1402
  %v1405 = vshrl.u32 %v67, 16
  %v1407 = vrot.slane %v1405, 4
  %v1408 = vshll.u32 %v67, 16
  %v1410 = vrot.slane %v1408, 5
  %v1411 = vor.u32 %v1407, %v1410
  %v1412 = vrot.slane %v1411, 4
  %v1414 = vshll.u32 %v68, 16
  %v1416 = vrot.slane %v1414, 5
  %v1417 = vsel %vm91, %v1412, %v1416
  %v1419 = vshrl.u32 %v85, 16
  %v1421 = vrot.slane %v1419, 4
  %v1422 = vshll.u32 %v85, 16
  %v1424 = vrot.slane %v1422, 5
  %v1425 = vor.u32 %v1421, %v1424
  %v1426 = vrot.slane %v1425, 4
  %v1428 = vshll.u32 %v86, 16
  %v1430 = vrot.slane %v1428, 5
  %v1431 = vsel %vm91, %v1426, %v1430
  %s1432 = scalar_lea.vmem %s1, 24
  %v1433 = vld [vmem:[%s1432] sm:$0xf]
  %v1434 = vld [vmem:[%s1432 + $0x4] sm:$0xf]
  %v1435 = vunpack.c.l.b16 %v1389
  %v1436 = vunpack.c.l.b16 %v1403
  %v1437 = vunpack.c.l.b16 %v1417
  %v1438 = vunpack.c.l.b16 %v1431
  %v1439 = vpack.c.b16 %v545, %v544
  %v1440 = vpack.c.b16 %v547, %v546
  %v1441 = vpack.c.b16 %v549, %v548
  %v1442 = vpack.c.b16 %v1435, %v550
  %v1443 = vpack.c.b16 %v553, %v552
  %v1444 = vpack.c.b16 %v555, %v554
  %v1445 = vpack.c.b16 %v557, %v556
  %v1446 = vpack.c.b16 %v1436, %v558
  %v1447 = vpack.c.b16 %v561, %v560
  %v1448 = vpack.c.b16 %v563, %v562
  %v1449 = vpack.c.b16 %v565, %v564
  %v1450 = vpack.c.b16 %v1437, %v566
  %v1451 = vpack.c.b16 %v569, %v568
  %v1452 = vpack.c.b16 %v571, %v570
  %v1453 = vpack.c.b16 %v573, %v572
  %v1454 = vpack.c.b16 %v1438, %v574
  %v1457 = vunpack.c.l.b16 %v1433
  %v1458 = vunpack.c.l.b16 %v1434
  %v1459 = vpack.c.b16 %v1458, %v1457
  %v1462 = vsel %vm597, %v1439, 0
  %v1465 = vsel %vm597, %v1440, 0
  %v1468 = vsel %vm597, %v1441, 0
  %v1471 = vsel %vm597, %v1442, 0
  %v1474 = vsel %vm597, %v1443, 0
  %v1477 = vsel %vm597, %v1444, 0
  %v1480 = vsel %vm597, %v1445, 0
  %v1483 = vsel %vm597, %v1446, 0
  %v1486 = vsel %vm597, %v1447, 0
  %v1489 = vsel %vm597, %v1448, 0
  %v1492 = vsel %vm597, %v1449, 0
  %v1495 = vsel %vm597, %v1450, 0
  %v1498 = vsel %vm597, %v1451, 0
  %v1501 = vsel %vm597, %v1452, 0
  %v1504 = vsel %vm597, %v1453, 0
  %v1507 = vsel %vm597, %v1454, 0
  %1509 = vmatprep.subr.bf16.mxu0 0
  %1510 = vmatpush1.bf16.msra.mxu0 0
  %1511 = vmatprep.subr.bf16.mxu0 0
  %1512 = vmatpush1.bf16.msra.mxu0 0
  %1513 = vmatprep.subr.bf16.mxu0 0
  %1514 = vmatpush1.bf16.msra.mxu0 0
  %1515 = vmatprep.subr.bf16.mxu0 0
  %1516 = vmatpush1.bf16.msra.mxu0 0
  %1517 = vmatprep.subr.bf16.mxu0 0
  %1518 = vmatpush1.bf16.msra.mxu0 0
  %1519 = vmatprep.subr.bf16.mxu0 0
  %1520 = vmatpush1.bf16.msra.mxu0 0
  %1521 = vmatprep.subr.bf16.mxu0 0
  %1522 = vmatpush1.bf16.msra.mxu0 0
  %1523 = vmatprep.subr.bf16.mxu0 0
  %1524 = vmatpush1.bf16.msra.mxu0 %v1459
  %1525 = vmatprep.subr.bf16.mxu0 0
  %1526 = vmatpush2.bf16.msra.mxu0 0
  %1527 = vmatprep.subr.bf16.mxu0 0
  %1528 = vmatpush2.bf16.msra.mxu0 0
  %1529 = vmatprep.subr.bf16.mxu0 0
  %1530 = vmatpush2.bf16.msra.mxu0 0
  %1531 = vmatprep.subr.bf16.mxu0 0
  %1532 = vmatpush2.bf16.msra.mxu0 0
  %1533 = vmatprep.subr.bf16.mxu0 0
  %1534 = vmatpush2.bf16.msra.mxu0 0
  %1535 = vmatprep.subr.bf16.mxu0 0
  %1536 = vmatpush2.bf16.msra.mxu0 0
  %1537 = vmatprep.subr.bf16.mxu0 0
  %1538 = vmatpush2.bf16.msra.mxu0 0
  %1539 = vmatprep.subr.bf16.mxu0 0
  %1540 = vmatpush2.bf16.msra.mxu0 0
  %1541 = vmatprep.mubr.bf16.mxu0 0
  %1542 = vmatmul.mubr.bf16.gmra.mxu0 %v1462
  %v1543 = vpop.f32.mrf.mxu0
  %v1544 = vadd.f32 0.0, %v1543
  %v1545 = vpop.f32.mrf.mxu0
  %v1546 = vpop.f32.mrf.mxu0
  %v1547 = vadd.f32 0.0, %v1546
  %v1548 = vpop.f32.mrf.mxu0
  %1549 = vmatprep.mubr.bf16.mxu0 0
  %1550 = vmatmul.mubr.bf16.gmra.mxu0 %v1465
  %v1551 = vpop.f32.mrf.mxu0
  %v1552 = vadd.f32 0.0, %v1551
  %v1553 = vpop.f32.mrf.mxu0
  %v1554 = vpop.f32.mrf.mxu0
  %v1555 = vadd.f32 0.0, %v1554
  %v1556 = vpop.f32.mrf.mxu0
  %1557 = vmatprep.mubr.bf16.mxu0 0
  %1558 = vmatmul.mubr.bf16.gmra.mxu0 %v1468
  %v1559 = vpop.f32.mrf.mxu0
  %v1560 = vadd.f32 0.0, %v1559
  %v1561 = vpop.f32.mrf.mxu0
  %v1562 = vpop.f32.mrf.mxu0
  %v1563 = vadd.f32 0.0, %v1562
  %v1564 = vpop.f32.mrf.mxu0
  %1565 = vmatprep.mubr.bf16.mxu0 0
  %1566 = vmatmul.mubr.bf16.gmra.mxu0 %v1471
  %v1567 = vpop.f32.mrf.mxu0
  %v1568 = vadd.f32 0.0, %v1567
  %v1569 = vpop.f32.mrf.mxu0
  %v1570 = vpop.f32.mrf.mxu0
  %v1571 = vadd.f32 0.0, %v1570
  %v1572 = vpop.f32.mrf.mxu0
  %1573 = vmatprep.mubr.bf16.mxu0 0
  %1574 = vmatmul.mubr.bf16.gmra.mxu0 %v1474
  %v1575 = vpop.f32.mrf.mxu0
  %v1576 = vadd.f32 0.0, %v1575
  %v1577 = vpop.f32.mrf.mxu0
  %v1578 = vpop.f32.mrf.mxu0
  %v1579 = vadd.f32 0.0, %v1578
  %v1580 = vpop.f32.mrf.mxu0
  %1581 = vmatprep.mubr.bf16.mxu0 0
  %1582 = vmatmul.mubr.bf16.gmra.mxu0 %v1477
  %v1583 = vpop.f32.mrf.mxu0
  %v1584 = vadd.f32 0.0, %v1583
  %v1585 = vpop.f32.mrf.mxu0
  %v1586 = vpop.f32.mrf.mxu0
  %v1587 = vadd.f32 0.0, %v1586
  %v1588 = vpop.f32.mrf.mxu0
  %1589 = vmatprep.mubr.bf16.mxu0 0
  %1590 = vmatmul.mubr.bf16.gmra.mxu0 %v1480
  %v1591 = vpop.f32.mrf.mxu0
  %v1592 = vadd.f32 0.0, %v1591
  %v1593 = vpop.f32.mrf.mxu0
  %v1594 = vpop.f32.mrf.mxu0
  %v1595 = vadd.f32 0.0, %v1594
  %v1596 = vpop.f32.mrf.mxu0
  %1597 = vmatprep.mubr.bf16.mxu0 0
  %1598 = vmatmul.mubr.bf16.gmra.mxu0 %v1483
  %v1599 = vpop.f32.mrf.mxu0
  %v1600 = vadd.f32 0.0, %v1599
  %v1601 = vpop.f32.mrf.mxu0
  %v1602 = vpop.f32.mrf.mxu0
  %v1603 = vadd.f32 0.0, %v1602
  %v1604 = vpop.f32.mrf.mxu0
  %1605 = vmatprep.mubr.bf16.mxu0 0
  %1606 = vmatmul.mubr.bf16.gmra.mxu0 %v1486
  %v1607 = vpop.f32.mrf.mxu0
  %v1608 = vadd.f32 0.0, %v1607
  %v1609 = vpop.f32.mrf.mxu0
  %v1610 = vpop.f32.mrf.mxu0
  %v1611 = vadd.f32 0.0, %v1610
  %v1612 = vpop.f32.mrf.mxu0
  %1613 = vmatprep.mubr.bf16.mxu0 0
  %1614 = vmatmul.mubr.bf16.gmra.mxu0 %v1489
  %v1615 = vpop.f32.mrf.mxu0
  %v1616 = vadd.f32 0.0, %v1615
  %v1617 = vpop.f32.mrf.mxu0
  %v1618 = vpop.f32.mrf.mxu0
  %v1619 = vadd.f32 0.0, %v1618
  %v1620 = vpop.f32.mrf.mxu0
  %1621 = vmatprep.mubr.bf16.mxu0 0
  %1622 = vmatmul.mubr.bf16.gmra.mxu0 %v1492
  %v1623 = vpop.f32.mrf.mxu0
  %v1624 = vadd.f32 0.0, %v1623
  %v1625 = vpop.f32.mrf.mxu0
  %v1626 = vpop.f32.mrf.mxu0
  %v1627 = vadd.f32 0.0, %v1626
  %v1628 = vpop.f32.mrf.mxu0
  %1629 = vmatprep.mubr.bf16.mxu0 0
  %1630 = vmatmul.mubr.bf16.gmra.mxu0 %v1495
  %v1631 = vpop.f32.mrf.mxu0
  %v1632 = vadd.f32 0.0, %v1631
  %v1633 = vpop.f32.mrf.mxu0
  %v1634 = vpop.f32.mrf.mxu0
  %v1635 = vadd.f32 0.0, %v1634
  %v1636 = vpop.f32.mrf.mxu0
  %1637 = vmatprep.mubr.bf16.mxu0 0
  %1638 = vmatmul.mubr.bf16.gmra.mxu0 %v1498
  %v1639 = vpop.f32.mrf.mxu0
  %v1640 = vadd.f32 0.0, %v1639
  %v1641 = vpop.f32.mrf.mxu0
  %v1642 = vpop.f32.mrf.mxu0
  %v1643 = vadd.f32 0.0, %v1642
  %v1644 = vpop.f32.mrf.mxu0
  %1645 = vmatprep.mubr.bf16.mxu0 0
  %1646 = vmatmul.mubr.bf16.gmra.mxu0 %v1501
  %v1647 = vpop.f32.mrf.mxu0
  %v1648 = vadd.f32 0.0, %v1647
  %v1649 = vpop.f32.mrf.mxu0
  %v1650 = vpop.f32.mrf.mxu0
  %v1651 = vadd.f32 0.0, %v1650
  %v1652 = vpop.f32.mrf.mxu0
  %1653 = vmatprep.mubr.bf16.mxu0 0
  %1654 = vmatmul.mubr.bf16.gmra.mxu0 %v1504
  %v1655 = vpop.f32.mrf.mxu0
  %v1656 = vadd.f32 0.0, %v1655
  %v1657 = vpop.f32.mrf.mxu0
  %v1658 = vpop.f32.mrf.mxu0
  %v1659 = vadd.f32 0.0, %v1658
  %v1660 = vpop.f32.mrf.mxu0
  %1661 = vmatprep.mubr.bf16.mxu0 0
  %1662 = vmatmul.mubr.bf16.gmra.mxu0 %v1507
  %v1663 = vpop.f32.mrf.mxu0
  %v1664 = vadd.f32 0.0, %v1663
  %v1665 = vpop.f32.mrf.mxu0
  %v1666 = vpop.f32.mrf.mxu0
  %v1667 = vadd.f32 0.0, %v1666
  %v1668 = vpop.f32.mrf.mxu0
  %1669 = vdwg.mxu0
  %v1670 = vadd.f32 %v1344, %v1544
  %v1671 = vadd.f32 %v1345, %v1547
  %v1672 = vadd.f32 %v1346, %v1552
  %v1673 = vadd.f32 %v1347, %v1555
  %v1674 = vadd.f32 %v1348, %v1560
  %v1675 = vadd.f32 %v1349, %v1563
  %v1676 = vadd.f32 %v1350, %v1568
  %v1677 = vadd.f32 %v1351, %v1571
  %v1678 = vadd.f32 %v1352, %v1576
  %v1679 = vadd.f32 %v1353, %v1579
  %v1680 = vadd.f32 %v1354, %v1584
  %v1681 = vadd.f32 %v1355, %v1587
  %v1682 = vadd.f32 %v1356, %v1592
  %v1683 = vadd.f32 %v1357, %v1595
  %v1684 = vadd.f32 %v1358, %v1600
  %v1685 = vadd.f32 %v1359, %v1603
  %v1686 = vadd.f32 %v1360, %v1608
  %v1687 = vadd.f32 %v1361, %v1611
  %v1688 = vadd.f32 %v1362, %v1616
  %v1689 = vadd.f32 %v1363, %v1619
  %v1690 = vadd.f32 %v1364, %v1624
  %v1691 = vadd.f32 %v1365, %v1627
  %v1692 = vadd.f32 %v1366, %v1632
  %v1693 = vadd.f32 %v1367, %v1635
  %v1694 = vadd.f32 %v1368, %v1640
  %v1695 = vadd.f32 %v1369, %v1643
  %v1696 = vadd.f32 %v1370, %v1648
  %v1697 = vadd.f32 %v1371, %v1651
  %v1698 = vadd.f32 %v1372, %v1656
  %v1699 = vadd.f32 %v1373, %v1659
  %v1700 = vadd.f32 %v1374, %v1664
  %v1701 = vadd.f32 %v1375, %v1667
  %v1702 = vld [vmem:[%s2] sm:$0x1]
  %v1704 = vlaneseq
  %v1705 = vshrl.u32 %v1704, 7
  %v1706 = vsub.s32 0, %v1705
  %v1707 = vrot.slane %v1702, %v1706
  %v1709 = vadd.f32 %v1670, %v1707
  %v1710 = vadd.f32 %v1671, %v1707
  %v1711 = vadd.f32 %v1672, %v1707
  %v1712 = vadd.f32 %v1673, %v1707
  %v1713 = vadd.f32 %v1674, %v1707
  %v1714 = vadd.f32 %v1675, %v1707
  %v1715 = vadd.f32 %v1676, %v1707
  %v1716 = vadd.f32 %v1677, %v1707
  %v1717 = vadd.f32 %v1678, %v1707
  %v1718 = vadd.f32 %v1679, %v1707
  %v1719 = vadd.f32 %v1680, %v1707
  %v1720 = vadd.f32 %v1681, %v1707
  %v1721 = vadd.f32 %v1682, %v1707
  %v1722 = vadd.f32 %v1683, %v1707
  %v1723 = vadd.f32 %v1684, %v1707
  %v1724 = vadd.f32 %v1685, %v1707
  %v1725 = vadd.f32 %v1686, %v1707
  %v1726 = vadd.f32 %v1687, %v1707
  %v1727 = vadd.f32 %v1688, %v1707
  %v1728 = vadd.f32 %v1689, %v1707
  %v1729 = vadd.f32 %v1690, %v1707
  %v1730 = vadd.f32 %v1691, %v1707
  %v1731 = vadd.f32 %v1692, %v1707
  %v1732 = vadd.f32 %v1693, %v1707
  %v1733 = vadd.f32 %v1694, %v1707
  %v1734 = vadd.f32 %v1695, %v1707
  %v1735 = vadd.f32 %v1696, %v1707
  %v1736 = vadd.f32 %v1697, %v1707
  %v1737 = vadd.f32 %v1698, %v1707
  %v1738 = vadd.f32 %v1699, %v1707
  %v1739 = vadd.f32 %v1700, %v1707
  %v1740 = vadd.f32 %v1701, %v1707
  %v1741 = vmax.f32 %v1709, 0.0
  %v1742 = vmax.f32 %v1710, 0.0
  %v1743 = vmax.f32 %v1711, 0.0
  %v1744 = vmax.f32 %v1712, 0.0
  %v1745 = vmax.f32 %v1713, 0.0
  %v1746 = vmax.f32 %v1714, 0.0
  %v1747 = vmax.f32 %v1715, 0.0
  %v1748 = vmax.f32 %v1716, 0.0
  %v1749 = vmax.f32 %v1717, 0.0
  %v1750 = vmax.f32 %v1718, 0.0
  %v1751 = vmax.f32 %v1719, 0.0
  %v1752 = vmax.f32 %v1720, 0.0
  %v1753 = vmax.f32 %v1721, 0.0
  %v1754 = vmax.f32 %v1722, 0.0
  %v1755 = vmax.f32 %v1723, 0.0
  %v1756 = vmax.f32 %v1724, 0.0
  %v1757 = vmax.f32 %v1725, 0.0
  %v1758 = vmax.f32 %v1726, 0.0
  %v1759 = vmax.f32 %v1727, 0.0
  %v1760 = vmax.f32 %v1728, 0.0
  %v1761 = vmax.f32 %v1729, 0.0
  %v1762 = vmax.f32 %v1730, 0.0
  %v1763 = vmax.f32 %v1731, 0.0
  %v1764 = vmax.f32 %v1732, 0.0
  %v1765 = vmax.f32 %v1733, 0.0
  %v1766 = vmax.f32 %v1734, 0.0
  %v1767 = vmax.f32 %v1735, 0.0
  %v1768 = vmax.f32 %v1736, 0.0
  %v1769 = vmax.f32 %v1737, 0.0
  %v1770 = vmax.f32 %v1738, 0.0
  %v1771 = vmax.f32 %v1739, 0.0
  %v1772 = vmax.f32 %v1740, 0.0
  %1773 = vxpose.xlu0.b32.start [1/16] %v1741, 128
  %1774 = vxpose.xlu0.b32.cont [2/16] %v1742, 128
  %1775 = vxpose.xlu0.b32.cont [3/16] %v1743, 128
  %1776 = vxpose.xlu0.b32.cont [4/16] %v1744, 128
  %1777 = vxpose.xlu0.b32.cont [5/16] %v1745, 128
  %1778 = vxpose.xlu0.b32.cont [6/16] %v1746, 128
  %1779 = vxpose.xlu0.b32.cont [7/16] %v1747, 128
  %1780 = vxpose.xlu0.b32.cont [8/16] %v1748, 128
  %1781 = vxpose.xlu0.b32.cont [9/16] %v1749, 128
  %1782 = vxpose.xlu0.b32.cont [10/16] %v1750, 128
  %1783 = vxpose.xlu0.b32.cont [11/16] %v1751, 128
  %1784 = vxpose.xlu0.b32.cont [12/16] %v1752, 128
  %1785 = vxpose.xlu0.b32.cont [13/16] %v1753, 128
  %1786 = vxpose.xlu0.b32.cont [14/16] %v1754, 128
  %1787 = vxpose.xlu0.b32.cont [15/16] %v1755, 128
  %1788 = vxpose.xlu0.b32.end [16/16] %v1756, 128
  %v1789 = vpop.trf.xlu0
  %v1790 = vpop.trf.xlu0
  %v1791 = vpop.trf.xlu0
  %v1792 = vpop.trf.xlu0
  %v1793 = vpop.trf.xlu0
  %v1794 = vpop.trf.xlu0
  %v1795 = vpop.trf.xlu0
  %v1796 = vpop.trf.xlu0
  %v1797 = vpop.trf.xlu0
  %v1798 = vpop.trf.xlu0
  %v1799 = vpop.trf.xlu0
  %v1800 = vpop.trf.xlu0
  %v1801 = vpop.trf.xlu0
  %v1802 = vpop.trf.xlu0
  %v1803 = vpop.trf.xlu0
  %v1804 = vpop.trf.xlu0
  %1805 = vxpose.xlu0.b32.start [1/16] %v1757, 128
  %1806 = vxpose.xlu0.b32.cont [2/16] %v1758, 128
  %1807 = vxpose.xlu0.b32.cont [3/16] %v1759, 128
  %1808 = vxpose.xlu0.b32.cont [4/16] %v1760, 128
  %1809 = vxpose.xlu0.b32.cont [5/16] %v1761, 128
  %1810 = vxpose.xlu0.b32.cont [6/16] %v1762, 128
  %1811 = vxpose.xlu0.b32.cont [7/16] %v1763, 128
  %1812 = vxpose.xlu0.b32.cont [8/16] %v1764, 128
  %1813 = vxpose.xlu0.b32.cont [9/16] %v1765, 128
  %1814 = vxpose.xlu0.b32.cont [10/16] %v1766, 128
  %1815 = vxpose.xlu0.b32.cont [11/16] %v1767, 128
  %1816 = vxpose.xlu0.b32.cont [12/16] %v1768, 128
  %1817 = vxpose.xlu0.b32.cont [13/16] %v1769, 128
  %1818 = vxpose.xlu0.b32.cont [14/16] %v1770, 128
  %1819 = vxpose.xlu0.b32.cont [15/16] %v1771, 128
  %1820 = vxpose.xlu0.b32.end [16/16] %v1772, 128
  %v1821 = vpop.trf.xlu0
  %v1822 = vpop.trf.xlu0
  %v1823 = vpop.trf.xlu0
  %v1824 = vpop.trf.xlu0
  %v1825 = vpop.trf.xlu0
  %v1826 = vpop.trf.xlu0
  %v1827 = vpop.trf.xlu0
  %v1828 = vpop.trf.xlu0
  %v1829 = vpop.trf.xlu0
  %v1830 = vpop.trf.xlu0
  %v1831 = vpop.trf.xlu0
  %v1832 = vpop.trf.xlu0
  %v1833 = vpop.trf.xlu0
  %v1834 = vpop.trf.xlu0
  %v1835 = vpop.trf.xlu0
  %v1836 = vpop.trf.xlu0
  %1837 = vst [vmem:[%s3] sm:$0xff] %v1789
  %1838 = vst [vmem:[%s3 + $0x8] sm:$0xff] %v1821
  // Predicated region
  $region14: #{conv_bn_relu_pallas.1} parent=0 // pred_check
    _
  $region15: #{conv_bn_relu_pallas.1} parent=0 // pred_check_branch
    %1840 = sbr.rel (0) target = $region17
  $region16: #{conv_bn_relu_pallas.1} parent=0 // pred_region
    _
  $region17: #{conv_bn_relu_pallas.1} parent=0 // pred_fallthru
    _
  // Predicated region
  $region18: #{conv_bn_relu_pallas.1} parent=0 // pred_check
    _
  $region19: #{conv_bn_relu_pallas.1} parent=0 // pred_check_branch
    %1842 = sbr.rel (0) target = $region21
  $region20: #{conv_bn_relu_pallas.1} parent=0 // pred_region
    _
  $region21: #{conv_bn_relu_pallas.1} parent=0 // pred_fallthru
    _

</llo_original>
